<compile_context>
chip_gen: v7x
topology: tpu7x:2x2x1
jax: 0.10.0
libtpu: 0.0.40
codegen_flags: <defaults>
</compile_context>

<pallas_src>
import jax
import jax.numpy as jnp
from jax import lax
from jax.experimental import pallas as pl
from jax.experimental.pallas import tpu as pltpu

LN_EPS = 1e-5


def _layernorm(x, gamma, beta):
    mu = jnp.mean(x, axis=-1, keepdims=True)
    var = jnp.mean((x - mu) ** 2, axis=-1, keepdims=True)
    return (x - mu) * lax.rsqrt(var + LN_EPS) * gamma + beta


def gene_importance_kernel(
    x_ref,      # (tb, G)  input tile
    gw_ref,     # (1, G)   raw global_weights (pre-sigmoid)
    ln1g_ref,   # (1, G)
    ln1b_ref,   # (1, G)
    w1_ref,     # (G, H)   matmul dtype (bf16 by default)
    b1_ref,     # (1, H)
    ln2g_ref,   # (1, H)
    ln2b_ref,   # (1, H)
    w2_ref,     # (H, G)   matmul dtype (bf16 by default)
    b2_ref,     # (1, G)
    o_ref,      # (tb, G)
):
    # context_net: LN(G) -> Linear(G,H) -> LN(H) -> ReLU -> [dropout: eval no-op]
    #              -> Linear(H,G) -> Sigmoid
    xn = _layernorm(x_ref[...].astype(jnp.float32), ln1g_ref[...], ln1b_ref[...])
    h = jnp.dot(xn.astype(w1_ref.dtype), w1_ref[...],
                preferred_element_type=jnp.float32) + b1_ref[...]
    h = jnp.maximum(_layernorm(h, ln2g_ref[...], ln2b_ref[...]), 0.0)
    logits = jnp.dot(h.astype(w2_ref.dtype), w2_ref[...],
                     preferred_element_type=jnp.float32) + b2_ref[...]
    ctx = jax.nn.sigmoid(logits)

    # sigmoid(global_weights): recomputed each grid step on the otherwise-idle
    # EUP slot. A pl.when(pid==0) hoist into scratch would be wrong under
    # megacore 'parallel' sharding (only one core would see step 0).
    gw = jax.nn.sigmoid(gw_ref[...].astype(jnp.float32))

    # Reload x here (short live range: avoids holding a tb x G f32 tile in
    # vregs across both matmuls; a VMEM vld reload is essentially free).
    x = x_ref[...].astype(jnp.float32)
    o_ref[...] = (x * gw * ctx).astype(o_ref.dtype)


def _default_tile_b(B):
    # Fill the MXU M dimension: 256 rows on v6e/v7x (256-wide MXU), 128 on v5e.
    target = 256
    try:
        kind = jax.devices()[0].device_kind.lower()
        if "v5e" in kind or "v5 lite" in kind or "v5lite" in kind:
            target = 128
    except Exception:
        pass
    return min(target, B)


def gene_importance_forward(x, params, *, tb=None, matmul_dtype=jnp.bfloat16):
    B, G = x.shape
    H = params["w1"].shape[1]

    if tb is None:
        tb = _default_tile_b(B)

    xb = x.dtype.itemsize
    wb = jnp.dtype(matmul_dtype).itemsize

    # Conservative VMEM estimate (assume everything double-buffered) used to
    # cap tb so the configuration also fits v7x's 64 MiB VMEM.
    def vmem_est(t):
        return (2 * 2 * t * G * xb              # x and out tiles (double-buffered)
                + 2 * 2 * G * H * wb            # w1 + w2 (worst-case double-buffered)
                + 2 * (6 * G + 3 * H) * 4)      # small parameter rows

    VMEM_BUDGET = 40 * 1024 * 1024
    while tb > 8 and vmem_est(tb) > VMEM_BUDGET:
        tb = max(8, tb // 2)

    vmem_limit = int(min(64 * 1024 * 1024,
                         max(4 * vmem_est(tb), 32 * 1024 * 1024)))

    # 1-D params reshaped to (1, N) so they sit lane-major in VMEM.
    gw = params["global_weights"].reshape(1, G).astype(jnp.float32)
    ln1g = params["ln1_gamma"].reshape(1, G).astype(jnp.float32)
    ln1b = params["ln1_beta"].reshape(1, G).astype(jnp.float32)
    w1 = params["w1"].astype(matmul_dtype)
    b1 = params["b1"].reshape(1, H).astype(jnp.float32)
    ln2g = params["ln2_gamma"].reshape(1, H).astype(jnp.float32)
    ln2b = params["ln2_beta"].reshape(1, H).astype(jnp.float32)
    w2 = params["w2"].astype(matmul_dtype)
    b2 = params["b2"].reshape(1, G).astype(jnp.float32)

    grid = (pl.cdiv(B, tb),)

    def xmap(i):
        return (i, 0)

    def pmap(i):  # parameters: same full block every grid step
        return (0, 0)

    cost = pl.CostEstimate(
        flops=int(4 * B * G * H + 8 * B * G),
        transcendentals=int(B * G + grid[0] * G + 2 * B),
        bytes_accessed=int(2 * B * G * xb + 2 * G * H * wb + (6 * G + 3 * H) * 4),
    )

    def build(single_buffer_params):
        def pspec(shape):
            if single_buffer_params:
                # constant across the grid -> no need for double buffering
                return pl.BlockSpec(shape, pmap, pipeline_mode=pl.Buffered(1))
            return pl.BlockSpec(shape, pmap)

        return pl.pallas_call(
            gene_importance_kernel,
            out_shape=jax.ShapeDtypeStruct((B, G), x.dtype),
            grid_spec=pltpu.PrefetchScalarGridSpec(
                num_scalar_prefetch=0,
                grid=grid,
                in_specs=[
                    pl.BlockSpec((tb, G), xmap),   # x (pipelined)
                    pspec((1, G)),                 # global_weights
                    pspec((1, G)),                 # ln1 gamma
                    pspec((1, G)),                 # ln1 beta
                    pspec((G, H)),                 # w1
                    pspec((1, H)),                 # b1
                    pspec((1, H)),                 # ln2 gamma
                    pspec((1, H)),                 # ln2 beta
                    pspec((H, G)),                 # w2
                    pspec((1, G)),                 # b2
                ],
                out_specs=pl.BlockSpec((tb, G), xmap),
            ),
            compiler_params=pltpu.CompilerParams(
                dimension_semantics=("parallel",),
                vmem_limit_bytes=vmem_limit,
            ),
            cost_estimate=cost,
        )

    args = (x, gw, ln1g, ln1b, w1, b1, ln2g, ln2b, w2, b2)
    try:
        return build(True)(*args)
    except Exception:
        # TODO(synk): some jax versions reject Buffered(1); retry with default buffering.
        return build(False)(*args)


def init_params(key, n_genes, n_hidden):
    k1, k2, k3, k4 = jax.random.split(key, 4)
    # Linear init ~ U(-1/sqrt(in), 1/sqrt(in)) like PyTorch; stored as [in, out].
    lim1 = 1.0 / jnp.sqrt(n_genes)
    lim2 = 1.0 / jnp.sqrt(n_hidden)
    return {
        "global_weights": jnp.ones((n_genes,), jnp.float32),  # nn.Parameter(torch.ones(n_genes))
        "ln1_gamma": jnp.ones((n_genes,), jnp.float32),
        "ln1_beta": jnp.zeros((n_genes,), jnp.float32),
        "w1": jax.random.uniform(k1, (n_genes, n_hidden), jnp.float32, -lim1, lim1),
        "b1": jax.random.uniform(k2, (n_hidden,), jnp.float32, -lim1, lim1),
        "ln2_gamma": jnp.ones((n_hidden,), jnp.float32),
        "ln2_beta": jnp.zeros((n_hidden,), jnp.float32),
        "w2": jax.random.uniform(k3, (n_hidden, n_genes), jnp.float32, -lim2, lim2),
        "b2": jax.random.uniform(k4, (n_genes,), jnp.float32, -lim2, lim2),
    }


def reference_forward(x, p):
    """Pure-JAX f32 reference for validation."""
    def ln(v, g, b):
        mu = jnp.mean(v, axis=-1, keepdims=True)
        var = jnp.mean((v - mu) ** 2, axis=-1, keepdims=True)
        return (v - mu) / jnp.sqrt(var + LN_EPS) * g + b

    gw = jax.nn.sigmoid(p["global_weights"])
    h = ln(x, p["ln1_gamma"], p["ln1_beta"]) @ p["w1"] + p["b1"]
    h = jnp.maximum(ln(h, p["ln2_gamma"], p["ln2_beta"]), 0.0)
    ctx = jax.nn.sigmoid(h @ p["w2"] + p["b2"])
    return x * gw * ctx


if __name__ == "__main__":
    B, G, H = 16, 256, 128  # batch, n_genes, n_hidden
    key = jax.random.PRNGKey(0)
    kx, kp = jax.random.split(key)

    x = jax.random.normal(kx, (B, G), jnp.float32)
    params = init_params(kp, G, H)
    ref = reference_forward(x, params)

    # Exact-precision path (f32 matmuls), small tb -> multi-step pipelined grid.
    out_f32 = gene_importance_forward(x, params, tb=8, matmul_dtype=jnp.float32)
    out_f32 = jax.block_until_ready(out_f32)
    assert out_f32.shape == (B, G) and out_f32.dtype == x.dtype
    assert jnp.allclose(out_f32, ref, atol=1e-5, rtol=1e-5), "f32 path mismatch"

    # Default path: bf16 MXU inputs with f32 accumulation, auto batch tiling.
    out = gene_importance_forward(x, params)
    out = jax.block_until_ready(out)
    assert out.shape == (B, G) and out.dtype == x.dtype
    assert jnp.allclose(out, ref, atol=5e-2, rtol=5e-2), "bf16 path mismatch"

    print("KERNEL_OK")
</pallas_src>

<mosaic_0001>
module attributes {stable_mosaic.version = 11 : i64} {
  func.func @gene_importance_kernel(%arg0: i32, %arg1: memref<8x256xf32, #tpu.memory_space<vmem>>, %arg2: memref<1x256xf32, #tpu.memory_space<vmem>>, %arg3: memref<1x256xf32, #tpu.memory_space<vmem>>, %arg4: memref<1x256xf32, #tpu.memory_space<vmem>>, %arg5: memref<256x128xf32, #tpu.memory_space<vmem>>, %arg6: memref<1x128xf32, #tpu.memory_space<vmem>>, %arg7: memref<1x128xf32, #tpu.memory_space<vmem>>, %arg8: memref<1x128xf32, #tpu.memory_space<vmem>>, %arg9: memref<128x256xf32, #tpu.memory_space<vmem>>, %arg10: memref<1x256xf32, #tpu.memory_space<vmem>>, %arg11: memref<8x256xf32, #tpu.memory_space<vmem>>) attributes {dimension_semantics = [#tpu.dimension_semantics<parallel>], iteration_bounds = array<i64: 2>, scalar_prefetch = 0 : i64, scratch_operands = 0 : i64, tpu.core_type = #tpu.core_type<tc>, window_params = [{transform_indices = @transform_0, window_bounds = array<i64: 8, 256>}, {pipeline_mode = #tpu.pipeline_mode<synchronous>, transform_indices = @transform_1, window_bounds = array<i64: 1, 256>}, {pipeline_mode = #tpu.pipeline_mode<synchronous>, transform_indices = @transform_2, window_bounds = array<i64: 1, 256>}, {pipeline_mode = #tpu.pipeline_mode<synchronous>, transform_indices = @transform_3, window_bounds = array<i64: 1, 256>}, {pipeline_mode = #tpu.pipeline_mode<synchronous>, transform_indices = @transform_4, window_bounds = array<i64: 256, 128>}, {pipeline_mode = #tpu.pipeline_mode<synchronous>, transform_indices = @transform_5, window_bounds = array<i64: 1, 128>}, {pipeline_mode = #tpu.pipeline_mode<synchronous>, transform_indices = @transform_6, window_bounds = array<i64: 1, 128>}, {pipeline_mode = #tpu.pipeline_mode<synchronous>, transform_indices = @transform_7, window_bounds = array<i64: 1, 128>}, {pipeline_mode = #tpu.pipeline_mode<synchronous>, transform_indices = @transform_8, window_bounds = array<i64: 128, 256>}, {pipeline_mode = #tpu.pipeline_mode<synchronous>, transform_indices = @transform_9, window_bounds = array<i64: 1, 256>}, {transform_indices = @transform_10, window_bounds = array<i64: 8, 256>}]} {
    %c0 = arith.constant 0 : index
    %c0_0 = arith.constant 0 : index
    %0 = vector.load %arg1[%c0, %c0_0] : memref<8x256xf32, #tpu.memory_space<vmem>>, vector<8x256xf32>
    %c0_1 = arith.constant 0 : index
    %c0_2 = arith.constant 0 : index
    %1 = vector.load %arg3[%c0_1, %c0_2] : memref<1x256xf32, #tpu.memory_space<vmem>>, vector<1x256xf32>
    %c0_3 = arith.constant 0 : index
    %c0_4 = arith.constant 0 : index
    %2 = vector.load %arg4[%c0_3, %c0_4] : memref<1x256xf32, #tpu.memory_space<vmem>>, vector<1x256xf32>
    %cst = arith.constant dense<0.000000e+00> : vector<8xf32>
    %3 = vector.multi_reduction <add>, %0, %cst [1] : vector<8x256xf32> to vector<8xf32>
    %4 = vector.shape_cast %3 : vector<8xf32> to vector<8x1xf32>
    %cst_5 = arith.constant 2.560000e+02 : f32
    %5 = vector.broadcast %cst_5 : f32 to vector<8x1xf32>
    %6 = arith.divf %4, %5 : vector<8x1xf32>
    %7 = vector.broadcast %6 : vector<8x1xf32> to vector<8x256xf32>
    %8 = arith.subf %0, %7 : vector<8x256xf32>
    %9 = arith.mulf %8, %8 : vector<8x256xf32>
    %cst_6 = arith.constant dense<0.000000e+00> : vector<8xf32>
    %10 = vector.multi_reduction <add>, %9, %cst_6 [1] : vector<8x256xf32> to vector<8xf32>
    %11 = vector.shape_cast %10 : vector<8xf32> to vector<8x1xf32>
    %cst_7 = arith.constant 2.560000e+02 : f32
    %12 = vector.broadcast %cst_7 : f32 to vector<8x1xf32>
    %13 = arith.divf %11, %12 : vector<8x1xf32>
    %14 = vector.broadcast %6 : vector<8x1xf32> to vector<8x256xf32>
    %15 = arith.subf %0, %14 : vector<8x256xf32>
    %cst_8 = arith.constant 9.99999974E-6 : f32
    %16 = vector.broadcast %cst_8 : f32 to vector<8x1xf32>
    %17 = arith.addf %13, %16 : vector<8x1xf32>
    %18 = math.rsqrt %17 : vector<8x1xf32>
    %19 = vector.broadcast %18 : vector<8x1xf32> to vector<8x256xf32>
    %20 = arith.mulf %15, %19 : vector<8x256xf32>
    %21 = vector.broadcast %1 : vector<1x256xf32> to vector<8x256xf32>
    %22 = arith.mulf %20, %21 : vector<8x256xf32>
    %23 = vector.broadcast %2 : vector<1x256xf32> to vector<8x256xf32>
    %24 = arith.addf %22, %23 : vector<8x256xf32>
    %c0_9 = arith.constant 0 : index
    %c0_10 = arith.constant 0 : index
    %25 = vector.load %arg5[%c0_9, %c0_10] : memref<256x128xf32, #tpu.memory_space<vmem>>, vector<256x128xf32>
    %cst_11 = arith.constant dense<0.000000e+00> : vector<8x128xf32>
    %26 = tpu.matmul %24, %25, %cst_11 {dimension_numbers = #tpu.dot_dimension_numbers<[1], [0], [0], [1], [0, 0, 1, 1], [], []>} : vector<8x256xf32>, vector<256x128xf32>, vector<8x128xf32> -> vector<8x128xf32>
    %c0_12 = arith.constant 0 : index
    %c0_13 = arith.constant 0 : index
    %27 = vector.load %arg6[%c0_12, %c0_13] : memref<1x128xf32, #tpu.memory_space<vmem>>, vector<1x128xf32>
    %28 = vector.broadcast %27 : vector<1x128xf32> to vector<8x128xf32>
    %29 = arith.addf %26, %28 : vector<8x128xf32>
    %c0_14 = arith.constant 0 : index
    %c0_15 = arith.constant 0 : index
    %30 = vector.load %arg7[%c0_14, %c0_15] : memref<1x128xf32, #tpu.memory_space<vmem>>, vector<1x128xf32>
    %c0_16 = arith.constant 0 : index
    %c0_17 = arith.constant 0 : index
    %31 = vector.load %arg8[%c0_16, %c0_17] : memref<1x128xf32, #tpu.memory_space<vmem>>, vector<1x128xf32>
    %cst_18 = arith.constant dense<0.000000e+00> : vector<8xf32>
    %32 = vector.multi_reduction <add>, %29, %cst_18 [1] : vector<8x128xf32> to vector<8xf32>
    %33 = vector.shape_cast %32 : vector<8xf32> to vector<8x1xf32>
    %cst_19 = arith.constant 1.280000e+02 : f32
    %34 = vector.broadcast %cst_19 : f32 to vector<8x1xf32>
    %35 = arith.divf %33, %34 : vector<8x1xf32>
    %36 = vector.broadcast %35 : vector<8x1xf32> to vector<8x128xf32>
    %37 = arith.subf %29, %36 : vector<8x128xf32>
    %38 = arith.mulf %37, %37 : vector<8x128xf32>
    %cst_20 = arith.constant dense<0.000000e+00> : vector<8xf32>
    %39 = vector.multi_reduction <add>, %38, %cst_20 [1] : vector<8x128xf32> to vector<8xf32>
    %40 = vector.shape_cast %39 : vector<8xf32> to vector<8x1xf32>
    %cst_21 = arith.constant 1.280000e+02 : f32
    %41 = vector.broadcast %cst_21 : f32 to vector<8x1xf32>
    %42 = arith.divf %40, %41 : vector<8x1xf32>
    %43 = vector.broadcast %35 : vector<8x1xf32> to vector<8x128xf32>
    %44 = arith.subf %29, %43 : vector<8x128xf32>
    %cst_22 = arith.constant 9.99999974E-6 : f32
    %45 = vector.broadcast %cst_22 : f32 to vector<8x1xf32>
    %46 = arith.addf %42, %45 : vector<8x1xf32>
    %47 = math.rsqrt %46 : vector<8x1xf32>
    %48 = vector.broadcast %47 : vector<8x1xf32> to vector<8x128xf32>
    %49 = arith.mulf %44, %48 : vector<8x128xf32>
    %50 = vector.broadcast %30 : vector<1x128xf32> to vector<8x128xf32>
    %51 = arith.mulf %49, %50 : vector<8x128xf32>
    %52 = vector.broadcast %31 : vector<1x128xf32> to vector<8x128xf32>
    %53 = arith.addf %51, %52 : vector<8x128xf32>
    %cst_23 = arith.constant 0.000000e+00 : f32
    %54 = vector.broadcast %cst_23 : f32 to vector<8x128xf32>
    %55 = arith.maximumf %53, %54 : vector<8x128xf32>
    %c0_24 = arith.constant 0 : index
    %c0_25 = arith.constant 0 : index
    %56 = vector.load %arg9[%c0_24, %c0_25] : memref<128x256xf32, #tpu.memory_space<vmem>>, vector<128x256xf32>
    %cst_26 = arith.constant dense<0.000000e+00> : vector<8x256xf32>
    %57 = tpu.matmul %55, %56, %cst_26 {dimension_numbers = #tpu.dot_dimension_numbers<[1], [0], [0], [1], [0, 0, 1, 1], [], []>} : vector<8x128xf32>, vector<128x256xf32>, vector<8x256xf32> -> vector<8x256xf32>
    %c0_27 = arith.constant 0 : index
    %c0_28 = arith.constant 0 : index
    %58 = vector.load %arg10[%c0_27, %c0_28] : memref<1x256xf32, #tpu.memory_space<vmem>>, vector<1x256xf32>
    %59 = vector.broadcast %58 : vector<1x256xf32> to vector<8x256xf32>
    %60 = arith.addf %57, %59 : vector<8x256xf32>
    %61 = arith.negf %60 : vector<8x256xf32>
    %62 = math.exp %61 : vector<8x256xf32>
    %cst_29 = arith.constant 1.000000e+00 : f32
    %63 = vector.broadcast %cst_29 : f32 to vector<8x256xf32>
    %64 = arith.addf %63, %62 : vector<8x256xf32>
    %65 = arith.divf %63, %64 : vector<8x256xf32>
    %c0_30 = arith.constant 0 : index
    %c0_31 = arith.constant 0 : index
    %66 = vector.load %arg2[%c0_30, %c0_31] : memref<1x256xf32, #tpu.memory_space<vmem>>, vector<1x256xf32>
    %67 = arith.negf %66 : vector<1x256xf32>
    %68 = math.exp %67 : vector<1x256xf32>
    %cst_32 = arith.constant 1.000000e+00 : f32
    %69 = vector.broadcast %cst_32 : f32 to vector<1x256xf32>
    %70 = arith.addf %69, %68 : vector<1x256xf32>
    %71 = arith.divf %69, %70 : vector<1x256xf32>
    %c0_33 = arith.constant 0 : index
    %c0_34 = arith.constant 0 : index
    %72 = vector.load %arg1[%c0_33, %c0_34] : memref<8x256xf32, #tpu.memory_space<vmem>>, vector<8x256xf32>
    %73 = vector.broadcast %71 : vector<1x256xf32> to vector<8x256xf32>
    %74 = arith.mulf %72, %73 : vector<8x256xf32>
    %75 = arith.mulf %74, %65 : vector<8x256xf32>
    %c0_35 = arith.constant 0 : index
    %c0_36 = arith.constant 0 : index
    %76 = vector.load %arg11[%c0_35, %c0_36] : memref<8x256xf32, #tpu.memory_space<vmem>>, vector<8x256xf32>
    tpu.vector_store %arg11[%c0_35, %c0_36], %75 {strides = array<i32>} : memref<8x256xf32, #tpu.memory_space<vmem>>, vector<8x256xf32>,
    return
  }
  func.func @transform_0(%arg0: i32) -> (i32, i32) {
    %c0_i32 = arith.constant 0 : i32
    %c0_i32_0 = arith.constant 0 : i32
    return %arg0, %c0_i32 : i32, i32
  }
  func.func @transform_1(%arg0: i32) -> (i32, i32) {
    %c0_i32 = arith.constant 0 : i32
    %c0_i32_0 = arith.constant 0 : i32
    %c0_i32_1 = arith.constant 0 : i32
    return %c0_i32, %c0_i32_0 : i32, i32
  }
  func.func @transform_2(%arg0: i32) -> (i32, i32) {
    %c0_i32 = arith.constant 0 : i32
    %c0_i32_0 = arith.constant 0 : i32
    %c0_i32_1 = arith.constant 0 : i32
    return %c0_i32, %c0_i32_0 : i32, i32
  }
  func.func @transform_3(%arg0: i32) -> (i32, i32) {
    %c0_i32 = arith.constant 0 : i32
    %c0_i32_0 = arith.constant 0 : i32
    %c0_i32_1 = arith.constant 0 : i32
    return %c0_i32, %c0_i32_0 : i32, i32
  }
  func.func @transform_4(%arg0: i32) -> (i32, i32) {
    %c0_i32 = arith.constant 0 : i32
    %c0_i32_0 = arith.constant 0 : i32
    %c0_i32_1 = arith.constant 0 : i32
    return %c0_i32, %c0_i32_0 : i32, i32
  }
  func.func @transform_5(%arg0: i32) -> (i32, i32) {
    %c0_i32 = arith.constant 0 : i32
    %c0_i32_0 = arith.constant 0 : i32
    %c0_i32_1 = arith.constant 0 : i32
    return %c0_i32, %c0_i32_0 : i32, i32
  }
  func.func @transform_6(%arg0: i32) -> (i32, i32) {
    %c0_i32 = arith.constant 0 : i32
    %c0_i32_0 = arith.constant 0 : i32
    %c0_i32_1 = arith.constant 0 : i32
    return %c0_i32, %c0_i32_0 : i32, i32
  }
  func.func @transform_7(%arg0: i32) -> (i32, i32) {
    %c0_i32 = arith.constant 0 : i32
    %c0_i32_0 = arith.constant 0 : i32
    %c0_i32_1 = arith.constant 0 : i32
    return %c0_i32, %c0_i32_0 : i32, i32
  }
  func.func @transform_8(%arg0: i32) -> (i32, i32) {
    %c0_i32 = arith.constant 0 : i32
    %c0_i32_0 = arith.constant 0 : i32
    %c0_i32_1 = arith.constant 0 : i32
    return %c0_i32, %c0_i32_0 : i32, i32
  }
  func.func @transform_9(%arg0: i32) -> (i32, i32) {
    %c0_i32 = arith.constant 0 : i32
    %c0_i32_0 = arith.constant 0 : i32
    %c0_i32_1 = arith.constant 0 : i32
    return %c0_i32, %c0_i32_0 : i32, i32
  }
  func.func @transform_10(%arg0: i32) -> (i32, i32) {
    %c0_i32 = arith.constant 0 : i32
    %c0_i32_0 = arith.constant 0 : i32
    return %arg0, %c0_i32 : i32, i32
  }
}

module attributes {stable_mosaic.version = 11 : i64} {
  func.func @gene_importance_kernel(%arg0: i32, %arg1: memref<8x256xf32, #tpu.memory_space<vmem>>, %arg2: memref<1x256xf32, #tpu.memory_space<vmem>>, %arg3: memref<1x256xf32, #tpu.memory_space<vmem>>, %arg4: memref<1x256xf32, #tpu.memory_space<vmem>>, %arg5: memref<256x128xf32, #tpu.memory_space<vmem>>, %arg6: memref<1x128xf32, #tpu.memory_space<vmem>>, %arg7: memref<1x128xf32, #tpu.memory_space<vmem>>, %arg8: memref<1x128xf32, #tpu.memory_space<vmem>>, %arg9: memref<128x256xf32, #tpu.memory_space<vmem>>, %arg10: memref<1x256xf32, #tpu.memory_space<vmem>>, %arg11: memref<8x256xf32, #tpu.memory_space<vmem>>) attributes {dimension_semantics = [#tpu.dimension_semantics<parallel>], iteration_bounds = array<i64: 2>, scalar_prefetch = 0 : i64, scratch_operands = 0 : i64, tpu.core_type = #tpu.core_type<tc>, window_params = [{transform_indices = @transform_0, window_bounds = array<i64: 8, 256>}, {pipeline_mode = #tpu.pipeline_mode<synchronous>, transform_indices = @transform_1, window_bounds = array<i64: 1, 256>}, {pipeline_mode = #tpu.pipeline_mode<synchronous>, transform_indices = @transform_2, window_bounds = array<i64: 1, 256>}, {pipeline_mode = #tpu.pipeline_mode<synchronous>, transform_indices = @transform_3, window_bounds = array<i64: 1, 256>}, {pipeline_mode = #tpu.pipeline_mode<synchronous>, transform_indices = @transform_4, window_bounds = array<i64: 256, 128>}, {pipeline_mode = #tpu.pipeline_mode<synchronous>, transform_indices = @transform_5, window_bounds = array<i64: 1, 128>}, {pipeline_mode = #tpu.pipeline_mode<synchronous>, transform_indices = @transform_6, window_bounds = array<i64: 1, 128>}, {pipeline_mode = #tpu.pipeline_mode<synchronous>, transform_indices = @transform_7, window_bounds = array<i64: 1, 128>}, {pipeline_mode = #tpu.pipeline_mode<synchronous>, transform_indices = @transform_8, window_bounds = array<i64: 128, 256>}, {pipeline_mode = #tpu.pipeline_mode<synchronous>, transform_indices = @transform_9, window_bounds = array<i64: 1, 256>}, {transform_indices = @transform_10, window_bounds = array<i64: 8, 256>}]} {
    %c0 = arith.constant 0 : index
    %c0_0 = arith.constant 0 : index
    %0 = vector.load %arg1[%c0, %c0_0] : memref<8x256xf32, #tpu.memory_space<vmem>>, vector<8x256xf32>
    %c0_1 = arith.constant 0 : index
    %c0_2 = arith.constant 0 : index
    %1 = vector.load %arg3[%c0_1, %c0_2] : memref<1x256xf32, #tpu.memory_space<vmem>>, vector<1x256xf32>
    %c0_3 = arith.constant 0 : index
    %c0_4 = arith.constant 0 : index
    %2 = vector.load %arg4[%c0_3, %c0_4] : memref<1x256xf32, #tpu.memory_space<vmem>>, vector<1x256xf32>
    %cst = arith.constant dense<0.000000e+00> : vector<8xf32>
    %3 = vector.multi_reduction <add>, %0, %cst [1] : vector<8x256xf32> to vector<8xf32>
    %4 = vector.shape_cast %3 : vector<8xf32> to vector<8x1xf32>
    %cst_5 = arith.constant 2.560000e+02 : f32
    %5 = vector.broadcast %cst_5 : f32 to vector<8x1xf32>
    %6 = arith.divf %4, %5 : vector<8x1xf32>
    %7 = vector.broadcast %6 : vector<8x1xf32> to vector<8x256xf32>
    %8 = arith.subf %0, %7 : vector<8x256xf32>
    %9 = arith.mulf %8, %8 : vector<8x256xf32>
    %cst_6 = arith.constant dense<0.000000e+00> : vector<8xf32>
    %10 = vector.multi_reduction <add>, %9, %cst_6 [1] : vector<8x256xf32> to vector<8xf32>
    %11 = vector.shape_cast %10 : vector<8xf32> to vector<8x1xf32>
    %cst_7 = arith.constant 2.560000e+02 : f32
    %12 = vector.broadcast %cst_7 : f32 to vector<8x1xf32>
    %13 = arith.divf %11, %12 : vector<8x1xf32>
    %14 = vector.broadcast %6 : vector<8x1xf32> to vector<8x256xf32>
    %15 = arith.subf %0, %14 : vector<8x256xf32>
    %cst_8 = arith.constant 9.99999974E-6 : f32
    %16 = vector.broadcast %cst_8 : f32 to vector<8x1xf32>
    %17 = arith.addf %13, %16 : vector<8x1xf32>
    %18 = math.rsqrt %17 : vector<8x1xf32>
    %19 = vector.broadcast %18 : vector<8x1xf32> to vector<8x256xf32>
    %20 = arith.mulf %15, %19 : vector<8x256xf32>
    %21 = vector.broadcast %1 : vector<1x256xf32> to vector<8x256xf32>
    %22 = arith.mulf %20, %21 : vector<8x256xf32>
    %23 = vector.broadcast %2 : vector<1x256xf32> to vector<8x256xf32>
    %24 = arith.addf %22, %23 : vector<8x256xf32>
    %c0_9 = arith.constant 0 : index
    %c0_10 = arith.constant 0 : index
    %25 = vector.load %arg5[%c0_9, %c0_10] : memref<256x128xf32, #tpu.memory_space<vmem>>, vector<256x128xf32>
    %cst_11 = arith.constant dense<0.000000e+00> : vector<8x128xf32>
    %26 = tpu.matmul %24, %25, %cst_11 {dimension_numbers = #tpu.dot_dimension_numbers<[1], [0], [0], [1], [0, 0, 1, 1], [], []>} : vector<8x256xf32>, vector<256x128xf32>, vector<8x128xf32> -> vector<8x128xf32>
    %c0_12 = arith.constant 0 : index
    %c0_13 = arith.constant 0 : index
    %27 = vector.load %arg6[%c0_12, %c0_13] : memref<1x128xf32, #tpu.memory_space<vmem>>, vector<1x128xf32>
    %28 = vector.broadcast %27 : vector<1x128xf32> to vector<8x128xf32>
    %29 = arith.addf %26, %28 : vector<8x128xf32>
    %c0_14 = arith.constant 0 : index
    %c0_15 = arith.constant 0 : index
    %30 = vector.load %arg7[%c0_14, %c0_15] : memref<1x128xf32, #tpu.memory_space<vmem>>, vector<1x128xf32>
    %c0_16 = arith.constant 0 : index
    %c0_17 = arith.constant 0 : index
    %31 = vector.load %arg8[%c0_16, %c0_17] : memref<1x128xf32, #tpu.memory_space<vmem>>, vector<1x128xf32>
    %cst_18 = arith.constant dense<0.000000e+00> : vector<8xf32>
    %32 = vector.multi_reduction <add>, %29, %cst_18 [1] : vector<8x128xf32> to vector<8xf32>
    %33 = vector.shape_cast %32 : vector<8xf32> to vector<8x1xf32>
    %cst_19 = arith.constant 1.280000e+02 : f32
    %34 = vector.broadcast %cst_19 : f32 to vector<8x1xf32>
    %35 = arith.divf %33, %34 : vector<8x1xf32>
    %36 = vector.broadcast %35 : vector<8x1xf32> to vector<8x128xf32>
    %37 = arith.subf %29, %36 : vector<8x128xf32>
    %38 = arith.mulf %37, %37 : vector<8x128xf32>
    %cst_20 = arith.constant dense<0.000000e+00> : vector<8xf32>
    %39 = vector.multi_reduction <add>, %38, %cst_20 [1] : vector<8x128xf32> to vector<8xf32>
    %40 = vector.shape_cast %39 : vector<8xf32> to vector<8x1xf32>
    %cst_21 = arith.constant 1.280000e+02 : f32
    %41 = vector.broadcast %cst_21 : f32 to vector<8x1xf32>
    %42 = arith.divf %40, %41 : vector<8x1xf32>
    %43 = vector.broadcast %35 : vector<8x1xf32> to vector<8x128xf32>
    %44 = arith.subf %29, %43 : vector<8x128xf32>
    %cst_22 = arith.constant 9.99999974E-6 : f32
    %45 = vector.broadcast %cst_22 : f32 to vector<8x1xf32>
    %46 = arith.addf %42, %45 : vector<8x1xf32>
    %47 = math.rsqrt %46 : vector<8x1xf32>
    %48 = vector.broadcast %47 : vector<8x1xf32> to vector<8x128xf32>
    %49 = arith.mulf %44, %48 : vector<8x128xf32>
    %50 = vector.broadcast %30 : vector<1x128xf32> to vector<8x128xf32>
    %51 = arith.mulf %49, %50 : vector<8x128xf32>
    %52 = vector.broadcast %31 : vector<1x128xf32> to vector<8x128xf32>
    %53 = arith.addf %51, %52 : vector<8x128xf32>
    %cst_23 = arith.constant 0.000000e+00 : f32
    %54 = vector.broadcast %cst_23 : f32 to vector<8x128xf32>
    %55 = arith.maximumf %53, %54 : vector<8x128xf32>
    %c0_24 = arith.constant 0 : index
    %c0_25 = arith.constant 0 : index
    %56 = vector.load %arg9[%c0_24, %c0_25] : memref<128x256xf32, #tpu.memory_space<vmem>>, vector<128x256xf32>
    %cst_26 = arith.constant dense<0.000000e+00> : vector<8x256xf32>
    %57 = tpu.matmul %55, %56, %cst_26 {dimension_numbers = #tpu.dot_dimension_numbers<[1], [0], [0], [1], [0, 0, 1, 1], [], []>} : vector<8x128xf32>, vector<128x256xf32>, vector<8x256xf32> -> vector<8x256xf32>
    %c0_27 = arith.constant 0 : index
    %c0_28 = arith.constant 0 : index
    %58 = vector.load %arg10[%c0_27, %c0_28] : memref<1x256xf32, #tpu.memory_space<vmem>>, vector<1x256xf32>
    %59 = vector.broadcast %58 : vector<1x256xf32> to vector<8x256xf32>
    %60 = arith.addf %57, %59 : vector<8x256xf32>
    %61 = arith.negf %60 : vector<8x256xf32>
    %62 = math.exp %61 : vector<8x256xf32>
    %cst_29 = arith.constant 1.000000e+00 : f32
    %63 = vector.broadcast %cst_29 : f32 to vector<8x256xf32>
    %64 = arith.addf %63, %62 : vector<8x256xf32>
    %65 = arith.divf %63, %64 : vector<8x256xf32>
    %c0_30 = arith.constant 0 : index
    %c0_31 = arith.constant 0 : index
    %66 = vector.load %arg2[%c0_30, %c0_31] : memref<1x256xf32, #tpu.memory_space<vmem>>, vector<1x256xf32>
    %67 = arith.negf %66 : vector<1x256xf32>
    %68 = math.exp %67 : vector<1x256xf32>
    %cst_32 = arith.constant 1.000000e+00 : f32
    %69 = vector.broadcast %cst_32 : f32 to vector<1x256xf32>
    %70 = arith.addf %69, %68 : vector<1x256xf32>
    %71 = arith.divf %69, %70 : vector<1x256xf32>
    %c0_33 = arith.constant 0 : index
    %c0_34 = arith.constant 0 : index
    %72 = vector.load %arg1[%c0_33, %c0_34] : memref<8x256xf32, #tpu.memory_space<vmem>>, vector<8x256xf32>
    %73 = vector.broadcast %71 : vector<1x256xf32> to vector<8x256xf32>
    %74 = arith.mulf %72, %73 : vector<8x256xf32>
    %75 = arith.mulf %74, %65 : vector<8x256xf32>
    %c0_35 = arith.constant 0 : index
    %c0_36 = arith.constant 0 : index
    %76 = vector.load %arg11[%c0_35, %c0_36] : memref<8x256xf32, #tpu.memory_space<vmem>>, vector<8x256xf32>
    tpu.vector_store %arg11[%c0_35, %c0_36], %75 {strides = array<i32>} : memref<8x256xf32, #tpu.memory_space<vmem>>, vector<8x256xf32>,
    return
  }
  func.func @transform_0(%arg0: i32) -> (i32, i32) {
    %c0_i32 = arith.constant 0 : i32
    %c0_i32_0 = arith.constant 0 : i32
    return %arg0, %c0_i32 : i32, i32
  }
  func.func @transform_1(%arg0: i32) -> (i32, i32) {
    %c0_i32 = arith.constant 0 : i32
    %c0_i32_0 = arith.constant 0 : i32
    %c0_i32_1 = arith.constant 0 : i32
    return %c0_i32, %c0_i32_0 : i32, i32
  }
  func.func @transform_2(%arg0: i32) -> (i32, i32) {
    %c0_i32 = arith.constant 0 : i32
    %c0_i32_0 = arith.constant 0 : i32
    %c0_i32_1 = arith.constant 0 : i32
    return %c0_i32, %c0_i32_0 : i32, i32
  }
  func.func @transform_3(%arg0: i32) -> (i32, i32) {
    %c0_i32 = arith.constant 0 : i32
    %c0_i32_0 = arith.constant 0 : i32
    %c0_i32_1 = arith.constant 0 : i32
    return %c0_i32, %c0_i32_0 : i32, i32
  }
  func.func @transform_4(%arg0: i32) -> (i32, i32) {
    %c0_i32 = arith.constant 0 : i32
    %c0_i32_0 = arith.constant 0 : i32
    %c0_i32_1 = arith.constant 0 : i32
    return %c0_i32, %c0_i32_0 : i32, i32
  }
  func.func @transform_5(%arg0: i32) -> (i32, i32) {
    %c0_i32 = arith.constant 0 : i32
    %c0_i32_0 = arith.constant 0 : i32
    %c0_i32_1 = arith.constant 0 : i32
    return %c0_i32, %c0_i32_0 : i32, i32
  }
  func.func @transform_6(%arg0: i32) -> (i32, i32) {
    %c0_i32 = arith.constant 0 : i32
    %c0_i32_0 = arith.constant 0 : i32
    %c0_i32_1 = arith.constant 0 : i32
    return %c0_i32, %c0_i32_0 : i32, i32
  }
  func.func @transform_7(%arg0: i32) -> (i32, i32) {
    %c0_i32 = arith.constant 0 : i32
    %c0_i32_0 = arith.constant 0 : i32
    %c0_i32_1 = arith.constant 0 : i32
    return %c0_i32, %c0_i32_0 : i32, i32
  }
  func.func @transform_8(%arg0: i32) -> (i32, i32) {
    %c0_i32 = arith.constant 0 : i32
    %c0_i32_0 = arith.constant 0 : i32
    %c0_i32_1 = arith.constant 0 : i32
    return %c0_i32, %c0_i32_0 : i32, i32
  }
  func.func @transform_9(%arg0: i32) -> (i32, i32) {
    %c0_i32 = arith.constant 0 : i32
    %c0_i32_0 = arith.constant 0 : i32
    %c0_i32_1 = arith.constant 0 : i32
    return %c0_i32, %c0_i32_0 : i32, i32
  }
  func.func @transform_10(%arg0: i32) -> (i32, i32) {
    %c0_i32 = arith.constant 0 : i32
    %c0_i32_0 = arith.constant 0 : i32
    return %arg0, %c0_i32 : i32, i32
  }
}

</mosaic_0001>

<llo_original>
// kernel: tpu_custom_call.1
$region0: #{tpu_custom_call.1}
  #allocation0 [shape = 'u32[]', space=smem, size = 0x4, offset = 0x4, fixed_abs, tag = 'smem constant byte address 0x4 - core index']
  #allocation1 [shape = 'u32[144,128]{1,0:T(1,128)}', space=vmem, size = 0x12000, scoped, tag = 'internal scratch']
  %s0 = inlined_call_operand.hbm [shape: f32[16,256], index: 0, kind: input, shape index: {}]
  %s1 = inlined_call_operand.vmem [shape: f32[1,256], index: 1, kind: input, shape index: {}]
  %s2 = inlined_call_operand.vmem [shape: f32[1,256], index: 2, kind: input, shape index: {}]
  %s3 = inlined_call_operand.vmem [shape: f32[1,256], index: 3, kind: input, shape index: {}]
  %s4 = inlined_call_operand.hbm [shape: f32[256,128], index: 4, kind: input, shape index: {}]
  %s5 = inlined_call_operand.vmem [shape: f32[1,128], index: 5, kind: input, shape index: {}]
  %s6 = inlined_call_operand.vmem [shape: f32[1,128], index: 6, kind: input, shape index: {}]
  %s7 = inlined_call_operand.vmem [shape: f32[1,128], index: 7, kind: input, shape index: {}]
  %s8 = inlined_call_operand.hbm [shape: f32[128,256], index: 8, kind: input, shape index: {}]
  %s9 = inlined_call_operand.vmem [shape: f32[1,256], index: 9, kind: input, shape index: {}]
  %s10 = inlined_call_operand.hbm [shape: f32[16,256], index: 10, kind: output, shape index: {}]
  %s11 = sld [smem:[#allocation0]]
  $region85: #{tpu_custom_call.1} parent=0
    _
  %s13 = ssub.s32 1, %s11
  %s14 = scalar_select 0, %s13, %s11
  $region1: #{tpu_custom_call.1} parent=0
    #allocation2 [shape = 'u8[16384]{0}', space=vmem, size = 0x4000, scoped, tag = 'input window, operand 0']
    #allocation3 [shape = 's32[2]{0}', space=sflag, size = 0x8, scoped, tag = 'scoped memory for tpu_custom_call.1']
    #allocation4 [shape = 's32[2]{0}', space=sflag, size = 0x8, scoped, tag = 'scoped memory for tpu_custom_call.1']
    #allocation5 [shape = 'u8[131072]{0}', space=vmem, size = 0x20000, scoped, tag = 'input window, operand 4, single buffered']
    #allocation6 [shape = 's32[1]{0}', space=sflag, size = 0x4, scoped, tag = 'scoped memory for tpu_custom_call.1']
    #allocation7 [shape = 'u8[131072]{0}', space=vmem, size = 0x20000, scoped, tag = 'input window, operand 8, single buffered']
    #allocation8 [shape = 'u8[16384]{0}', space=vmem, size = 0x4000, scoped, tag = 'output window, operand 0']
    %15 = vsyncpa [#allocation3], 0
    %s16 = scalar_lea.sflag [#allocation3], 1
    %17 = vsyncpa %s16, 0
    %18 = vsyncpa [#allocation6], 0
    %19 = vsyncpa [#allocation4], 0
    %s20 = scalar_lea.sflag [#allocation4], 1
    %21 = vsyncpa %s20, 0
    loop: start=0, step=1, limit=4
    $region2: #{tpu_custom_call.1} parent=1 // loop_pre_header
      _
    $region3: #{tpu_custom_call.1} parent=1 // loop_header
      %s23 = sphi 0, %s27
      %p24 = scmp.ge.s32.totalorder %s23, 4
      %s33 = sphi 0, %s35
      %s36 = sphi 0, %s33
      %s37 = sphi 0, %s36
      %s53 = sphi 0, %s37
      %s57 = sphi 0, %s57
      %s59 = sphi 0, %s57
      %s60 = sphi 0, %s59
      %s74 = sphi 0, %s60
      %s78 = sphi 0, %s78
      %s80 = sphi 0, %s78
      %s81 = sphi 0, %s80
      %s95 = sphi 0, %s81
      %s99 = sphi 0, %s99
      %s101 = sphi 0, %s99
      %s102 = sphi 0, %s101
      %s116 = sphi 0, %s102
      %s120 = sphi 0, %s120
      %s122 = sphi 0, %s120
      %s123 = sphi 0, %s122
      %s137 = sphi 0, %s123
      %s141 = sphi 0, %s141
      %s143 = sphi 0, %s141
      %s144 = sphi 0, %s143
      %s158 = sphi 0, %s144
      %s162 = sphi 0, %s162
      %s164 = sphi 0, %s162
      %s165 = sphi 0, %s164
      %s179 = sphi 0, %s165
      %s183 = sphi 0, %s183
      %s185 = sphi 0, %s183
      %s186 = sphi 0, %s185
      %s200 = sphi 0, %s186
      %s204 = sphi 0, %s204
      %s206 = sphi 0, %s204
      %s207 = sphi 0, %s206
      %s221 = sphi 0, %s207
      %s225 = sphi 0, %s225
      %s227 = sphi 0, %s225
      %s228 = sphi 0, %s227
      %s242 = sphi 0, %s228
      %s248 = sphi 0, %s250
      %s251 = sphi 0, %s248
      %s252 = sphi 0, %s251
      %s268 = sphi 0, %s252
    $region4: #{tpu_custom_call.1} parent=1 // loop_header_branch
      %26 = sbr.rel (%p24) target = $region8
    $region5: #{tpu_custom_call.1} parent=1 // loop_body
      %s28 = ssub.s32 %s23, 1
      %s29 = ssub.s32 %s23, 2
      %s30 = sadd.s32 %s23, 1
      %s31 = ssub.s32 %s23, %s30
      %p32 = scmp.eq.s32.totalorder %s31, 0
      %s34 = sadd.s32 %s33, 1
      %s35 = scalar_select %p32, %s33, %s34
      %p38 = pneg %p32
      %p39 = scmp.eq.s32.totalorder %s23, 1
      %p40 = por %p38, %p39
      %p41 = scmp.ne.s32.totalorder %s33, %s36
      %p42 = scmp.eq.s32.totalorder %s23, 0
      %p43 = por %p41, %p42
      %p44 = scmp.ne.s32.totalorder %s33, %s36
      %p45 = scmp.eq.s32.totalorder %s28, 1
      %p46 = por %p44, %p45
      %p47 = scmp.ne.s32.totalorder %s36, %s37
      %p48 = scmp.eq.s32.totalorder %s28, 0
      %p49 = por %p47, %p48
      %p50 = scmp.ne.s32.totalorder %s36, %s37
      %p51 = scmp.eq.s32.totalorder %s29, 1
      %p52 = por %p50, %p51
      %p54 = scmp.ne.s32.totalorder %s37, %s53
      %p55 = scmp.eq.s32.totalorder %s29, 0
      %p56 = por %p54, %p55
      %s58 = sadd.s32 %s57, 1
      %p61 = scmp.eq.s32.totalorder %s23, 1
      %p62 = scmp.ne.s32.totalorder %s57, %s59
      %p63 = scmp.eq.s32.totalorder %s23, 0
      %p64 = por %p62, %p63
      %p65 = scmp.ne.s32.totalorder %s57, %s59
      %p66 = scmp.eq.s32.totalorder %s28, 1
      %p67 = por %p65, %p66
      %p68 = scmp.ne.s32.totalorder %s59, %s60
      %p69 = scmp.eq.s32.totalorder %s28, 0
      %p70 = por %p68, %p69
      %p71 = scmp.ne.s32.totalorder %s59, %s60
      %p72 = scmp.eq.s32.totalorder %s29, 1
      %p73 = por %p71, %p72
      %p75 = scmp.ne.s32.totalorder %s60, %s74
      %p76 = scmp.eq.s32.totalorder %s29, 0
      %p77 = por %p75, %p76
      %s79 = sadd.s32 %s78, 1
      %p82 = scmp.eq.s32.totalorder %s23, 1
      %p83 = scmp.ne.s32.totalorder %s78, %s80
      %p84 = scmp.eq.s32.totalorder %s23, 0
      %p85 = por %p83, %p84
      %p86 = scmp.ne.s32.totalorder %s78, %s80
      %p87 = scmp.eq.s32.totalorder %s28, 1
      %p88 = por %p86, %p87
      %p89 = scmp.ne.s32.totalorder %s80, %s81
      %p90 = scmp.eq.s32.totalorder %s28, 0
      %p91 = por %p89, %p90
      %p92 = scmp.ne.s32.totalorder %s80, %s81
      %p93 = scmp.eq.s32.totalorder %s29, 1
      %p94 = por %p92, %p93
      %p96 = scmp.ne.s32.totalorder %s81, %s95
      %p97 = scmp.eq.s32.totalorder %s29, 0
      %p98 = por %p96, %p97
      %s100 = sadd.s32 %s99, 1
      %p103 = scmp.eq.s32.totalorder %s23, 1
      %p104 = scmp.ne.s32.totalorder %s99, %s101
      %p105 = scmp.eq.s32.totalorder %s23, 0
      %p106 = por %p104, %p105
      %p107 = scmp.ne.s32.totalorder %s99, %s101
      %p108 = scmp.eq.s32.totalorder %s28, 1
      %p109 = por %p107, %p108
      %p110 = scmp.ne.s32.totalorder %s101, %s102
      %p111 = scmp.eq.s32.totalorder %s28, 0
      %p112 = por %p110, %p111
      %p113 = scmp.ne.s32.totalorder %s101, %s102
      %p114 = scmp.eq.s32.totalorder %s29, 1
      %p115 = por %p113, %p114
      %p117 = scmp.ne.s32.totalorder %s102, %s116
      %p118 = scmp.eq.s32.totalorder %s29, 0
      %p119 = por %p117, %p118
      %s121 = sadd.s32 %s120, 1
      %p124 = scmp.eq.s32.totalorder %s23, 1
      %p125 = scmp.ne.s32.totalorder %s120, %s122
      %p126 = scmp.eq.s32.totalorder %s23, 0
      %p127 = por %p125, %p126
      %p128 = scmp.ne.s32.totalorder %s120, %s122
      %p129 = scmp.eq.s32.totalorder %s28, 1
      %p130 = por %p128, %p129
      %p131 = scmp.ne.s32.totalorder %s122, %s123
      %p132 = scmp.eq.s32.totalorder %s28, 0
      %p133 = por %p131, %p132
      %p134 = scmp.ne.s32.totalorder %s122, %s123
      %p135 = scmp.eq.s32.totalorder %s29, 1
      %p136 = por %p134, %p135
      %p138 = scmp.ne.s32.totalorder %s123, %s137
      %p139 = scmp.eq.s32.totalorder %s29, 0
      %p140 = por %p138, %p139
      %s142 = sadd.s32 %s141, 1
      %p145 = scmp.eq.s32.totalorder %s23, 1
      %p146 = scmp.ne.s32.totalorder %s141, %s143
      %p147 = scmp.eq.s32.totalorder %s23, 0
      %p148 = por %p146, %p147
      %p149 = scmp.ne.s32.totalorder %s141, %s143
      %p150 = scmp.eq.s32.totalorder %s28, 1
      %p151 = por %p149, %p150
      %p152 = scmp.ne.s32.totalorder %s143, %s144
      %p153 = scmp.eq.s32.totalorder %s28, 0
      %p154 = por %p152, %p153
      %p155 = scmp.ne.s32.totalorder %s143, %s144
      %p156 = scmp.eq.s32.totalorder %s29, 1
      %p157 = por %p155, %p156
      %p159 = scmp.ne.s32.totalorder %s144, %s158
      %p160 = scmp.eq.s32.totalorder %s29, 0
      %p161 = por %p159, %p160
      %s163 = sadd.s32 %s162, 1
      %p166 = scmp.eq.s32.totalorder %s23, 1
      %p167 = scmp.ne.s32.totalorder %s162, %s164
      %p168 = scmp.eq.s32.totalorder %s23, 0
      %p169 = por %p167, %p168
      %p170 = scmp.ne.s32.totalorder %s162, %s164
      %p171 = scmp.eq.s32.totalorder %s28, 1
      %p172 = por %p170, %p171
      %p173 = scmp.ne.s32.totalorder %s164, %s165
      %p174 = scmp.eq.s32.totalorder %s28, 0
      %p175 = por %p173, %p174
      %p176 = scmp.ne.s32.totalorder %s164, %s165
      %p177 = scmp.eq.s32.totalorder %s29, 1
      %p178 = por %p176, %p177
      %p180 = scmp.ne.s32.totalorder %s165, %s179
      %p181 = scmp.eq.s32.totalorder %s29, 0
      %p182 = por %p180, %p181
      %s184 = sadd.s32 %s183, 1
      %p187 = scmp.eq.s32.totalorder %s23, 1
      %p188 = scmp.ne.s32.totalorder %s183, %s185
      %p189 = scmp.eq.s32.totalorder %s23, 0
      %p190 = por %p188, %p189
      %p191 = scmp.ne.s32.totalorder %s183, %s185
      %p192 = scmp.eq.s32.totalorder %s28, 1
      %p193 = por %p191, %p192
      %p194 = scmp.ne.s32.totalorder %s185, %s186
      %p195 = scmp.eq.s32.totalorder %s28, 0
      %p196 = por %p194, %p195
      %p197 = scmp.ne.s32.totalorder %s185, %s186
      %p198 = scmp.eq.s32.totalorder %s29, 1
      %p199 = por %p197, %p198
      %p201 = scmp.ne.s32.totalorder %s186, %s200
      %p202 = scmp.eq.s32.totalorder %s29, 0
      %p203 = por %p201, %p202
      %s205 = sadd.s32 %s204, 1
      %p208 = scmp.eq.s32.totalorder %s23, 1
      %p209 = scmp.ne.s32.totalorder %s204, %s206
      %p210 = scmp.eq.s32.totalorder %s23, 0
      %p211 = por %p209, %p210
      %p212 = scmp.ne.s32.totalorder %s204, %s206
      %p213 = scmp.eq.s32.totalorder %s28, 1
      %p214 = por %p212, %p213
      %p215 = scmp.ne.s32.totalorder %s206, %s207
      %p216 = scmp.eq.s32.totalorder %s28, 0
      %p217 = por %p215, %p216
      %p218 = scmp.ne.s32.totalorder %s206, %s207
      %p219 = scmp.eq.s32.totalorder %s29, 1
      %p220 = por %p218, %p219
      %p222 = scmp.ne.s32.totalorder %s207, %s221
      %p223 = scmp.eq.s32.totalorder %s29, 0
      %p224 = por %p222, %p223
      %s226 = sadd.s32 %s225, 1
      %p229 = scmp.eq.s32.totalorder %s23, 1
      %p230 = scmp.ne.s32.totalorder %s225, %s227
      %p231 = scmp.eq.s32.totalorder %s23, 0
      %p232 = por %p230, %p231
      %p233 = scmp.ne.s32.totalorder %s225, %s227
      %p234 = scmp.eq.s32.totalorder %s28, 1
      %p235 = por %p233, %p234
      %p236 = scmp.ne.s32.totalorder %s227, %s228
      %p237 = scmp.eq.s32.totalorder %s28, 0
      %p238 = por %p236, %p237
      %p239 = scmp.ne.s32.totalorder %s227, %s228
      %p240 = scmp.eq.s32.totalorder %s29, 1
      %p241 = por %p239, %p240
      %p243 = scmp.ne.s32.totalorder %s228, %s242
      %p244 = scmp.eq.s32.totalorder %s29, 0
      %p245 = por %p243, %p244
      %s246 = ssub.s32 %s23, %s30
      %p247 = scmp.eq.s32.totalorder %s246, 0
      %s249 = sadd.s32 %s248, 1
      %s250 = scalar_select %p247, %s248, %s249
      %p253 = pneg %p247
      %p254 = scmp.eq.s32.totalorder %s23, 1
      %p255 = por %p253, %p254
      %p256 = scmp.ne.s32.totalorder %s248, %s251
      %p257 = scmp.eq.s32.totalorder %s23, 0
      %p258 = por %p256, %p257
      %p259 = scmp.ne.s32.totalorder %s248, %s251
      %p260 = scmp.eq.s32.totalorder %s28, 1
      %p261 = por %p259, %p260
      %p262 = scmp.ne.s32.totalorder %s251, %s252
      %p263 = scmp.eq.s32.totalorder %s28, 0
      %p264 = por %p262, %p263
      %p265 = scmp.ne.s32.totalorder %s251, %s252
      %p266 = scmp.eq.s32.totalorder %s29, 1
      %p267 = por %p265, %p266
      %p269 = scmp.ne.s32.totalorder %s252, %s268
      %p270 = scmp.eq.s32.totalorder %s29, 0
      %p271 = por %p269, %p270
      %p272 = scmp.le.s32.totalorder 1, %s23
      %p273 = scmp.lt.s32.totalorder %s23, 3
      %p274 = pnand %p272, %p273
      %p275 = pneg %p274
      // Predicated region
      $region9: #{tpu_custom_call.1} parent=5 // pred_check
        _
      $region10: #{tpu_custom_call.1} parent=5 // pred_check_branch
        %277 = sbr.rel (%p274) target = $region12
      $region11: #{tpu_custom_call.1} parent=5 // pred_region
        %s278 = ssub.s32 %s23, 1
        // Predicated region
        $region13: #{tpu_custom_call.1} parent=11 // pred_check
          %p279 = pneg %p70
        $region14: #{tpu_custom_call.1} parent=11 // pred_check_branch
          %281 = sbr.rel (%p279) target = $region16
        $region15: #{tpu_custom_call.1} parent=11 // pred_region
          _
        $region16: #{tpu_custom_call.1} parent=11 // pred_fallthru
          _
        // Predicated region
        $region17: #{tpu_custom_call.1} parent=11 // pred_check
          %p282 = pneg %p91
        $region18: #{tpu_custom_call.1} parent=11 // pred_check_branch
          %284 = sbr.rel (%p282) target = $region20
        $region19: #{tpu_custom_call.1} parent=11 // pred_region
          _
        $region20: #{tpu_custom_call.1} parent=11 // pred_fallthru
          _
        // Predicated region
        $region21: #{tpu_custom_call.1} parent=11 // pred_check
          %p285 = pneg %p112
        $region22: #{tpu_custom_call.1} parent=11 // pred_check_branch
          %287 = sbr.rel (%p285) target = $region24
        $region23: #{tpu_custom_call.1} parent=11 // pred_region
          _
        $region24: #{tpu_custom_call.1} parent=11 // pred_fallthru
          _
        // Predicated region
        $region25: #{tpu_custom_call.1} parent=11 // pred_check
          %p288 = pneg %p133
        $region26: #{tpu_custom_call.1} parent=11 // pred_check_branch
          %290 = sbr.rel (%p288) target = $region28
        $region27: #{tpu_custom_call.1} parent=11 // pred_region
          %s292 = ssub.s32 4096, 4096
          %293 = vsyncadd [#allocation6], %s292
          %s294 = sshll.u32 [#allocation5], 4
          %s295 = int_to_ptr.vmem [resolvable:$true] %s294
          %300 = dma.hbm_to_vmem [thread:$0]  %s4, 4096, %s295, [#allocation6], 128, 128, 8
        $region28: #{tpu_custom_call.1} parent=11 // pred_fallthru
          _
        // Predicated region
        $region29: #{tpu_custom_call.1} parent=11 // pred_check
          %p301 = pneg %p154
        $region30: #{tpu_custom_call.1} parent=11 // pred_check_branch
          %303 = sbr.rel (%p301) target = $region32
        $region31: #{tpu_custom_call.1} parent=11 // pred_region
          _
        $region32: #{tpu_custom_call.1} parent=11 // pred_fallthru
          _
        // Predicated region
        $region33: #{tpu_custom_call.1} parent=11 // pred_check
          %p304 = pneg %p175
        $region34: #{tpu_custom_call.1} parent=11 // pred_check_branch
          %306 = sbr.rel (%p304) target = $region36
        $region35: #{tpu_custom_call.1} parent=11 // pred_region
          _
        $region36: #{tpu_custom_call.1} parent=11 // pred_fallthru
          _
        // Predicated region
        $region37: #{tpu_custom_call.1} parent=11 // pred_check
          %p307 = pneg %p196
        $region38: #{tpu_custom_call.1} parent=11 // pred_check_branch
          %309 = sbr.rel (%p307) target = $region40
        $region39: #{tpu_custom_call.1} parent=11 // pred_region
          _
        $region40: #{tpu_custom_call.1} parent=11 // pred_fallthru
          _
        // Predicated region
        $region41: #{tpu_custom_call.1} parent=11 // pred_check
          %p310 = pneg %p217
        $region42: #{tpu_custom_call.1} parent=11 // pred_check_branch
          %312 = sbr.rel (%p310) target = $region44
        $region43: #{tpu_custom_call.1} parent=11 // pred_region
          %s314 = ssub.s32 4096, 4096
          %315 = vsyncadd [#allocation6], %s314
          %s316 = sshll.u32 [#allocation7], 4
          %s317 = int_to_ptr.vmem [resolvable:$true] %s316
          %322 = dma.hbm_to_vmem [thread:$0]  %s8, 4096, %s317, [#allocation6], 256, 256, 16
        $region44: #{tpu_custom_call.1} parent=11 // pred_fallthru
          _
        // Predicated region
        $region45: #{tpu_custom_call.1} parent=11 // pred_check
          %p323 = pneg %p238
        $region46: #{tpu_custom_call.1} parent=11 // pred_check_branch
          %325 = sbr.rel (%p323) target = $region48
        $region47: #{tpu_custom_call.1} parent=11 // pred_region
          _
        $region48: #{tpu_custom_call.1} parent=11 // pred_fallthru
          _
      $region12: #{tpu_custom_call.1} parent=5 // pred_fallthru
        _
      %p326 = scmp.lt.s32.totalorder %s23, 2
      // Predicated region
      $region49: #{tpu_custom_call.1} parent=5 // pred_check
        %p327 = pneg %p326
      $region50: #{tpu_custom_call.1} parent=5 // pred_check_branch
        %329 = sbr.rel (%p327) target = $region52
      $region51: #{tpu_custom_call.1} parent=5 // pred_region
        // Predicated region
        $region53: #{tpu_custom_call.1} parent=51 // pred_check
          %p330 = pneg %p43
        $region54: #{tpu_custom_call.1} parent=51 // pred_check_branch
          %332 = sbr.rel (%p330) target = $region56
        $region55: #{tpu_custom_call.1} parent=51 // pred_region
          %s333 = sand.u32 %s33, 1
          %s334 = scalar_lea.sflag [#allocation3], %s333
          %s335 = sand.u32 %s33, 1
          %s336 = smul.addr %s335, 16
          %s337 = scalar_lea.vmem [#allocation2], %s336
          %s339 = ssub.s32 256, 256
          %340 = vsyncadd %s334, %s339
          %s341 = smul.addr %s23, 2
          %s342 = smul.addr %s341, 128
          %s343 = scalar_lea.hbm %s0, %s342
          %s345 = sshll.u32 %s337, 4
          %s346 = int_to_ptr.vmem [resolvable:$true] %s345
          %348 = dma.hbm_to_vmem [thread:$0]  %s343, 256, %s346, %s334
        $region56: #{tpu_custom_call.1} parent=51 // pred_fallthru
          _
      $region52: #{tpu_custom_call.1} parent=5 // pred_fallthru
        _
      %p349 = scmp.le.s32.totalorder 1, %s23
      %p350 = scmp.lt.s32.totalorder %s23, 3
      %p351 = pnand %p349, %p350
      %p352 = pneg %p351
      // Predicated region
      $region57: #{tpu_custom_call.1} parent=5 // pred_check
        _
      $region58: #{tpu_custom_call.1} parent=5 // pred_check_branch
        %354 = sbr.rel (%p351) target = $region60
      $region59: #{tpu_custom_call.1} parent=5 // pred_region
        %s355 = ssub.s32 %s23, 1
        %s356 = sand.u32 %s36, 1
        %s357 = scalar_lea.sflag [#allocation3], %s356
        %s358 = sand.u32 %s36, 1
        %s359 = smul.addr %s358, 16
        %s360 = scalar_lea.vmem [#allocation2], %s359
        // Predicated region
        $region61: #{tpu_custom_call.1} parent=59 // pred_check
          %p361 = pneg %p49
        $region62: #{tpu_custom_call.1} parent=59 // pred_check_branch
          %363 = sbr.rel (%p361) target = $region64
        $region63: #{tpu_custom_call.1} parent=59 // pred_region
          %364 = dma.done %s357, 256
        $region64: #{tpu_custom_call.1} parent=59 // pred_fallthru
          _
        // Predicated region
        $region65: #{tpu_custom_call.1} parent=59 // pred_check
          %p365 = pneg %p133
        $region66: #{tpu_custom_call.1} parent=59 // pred_check_branch
          %367 = sbr.rel (%p365) target = $region68
        $region67: #{tpu_custom_call.1} parent=59 // pred_region
          %368 = dma.done [#allocation6], 4096
        $region68: #{tpu_custom_call.1} parent=59 // pred_fallthru
          _
        // Predicated region
        $region69: #{tpu_custom_call.1} parent=59 // pred_check
          %p369 = pneg %p217
        $region70: #{tpu_custom_call.1} parent=59 // pred_check_branch
          %371 = sbr.rel (%p369) target = $region72
        $region71: #{tpu_custom_call.1} parent=59 // pred_region
          %372 = dma.done [#allocation6], 4096
        $region72: #{tpu_custom_call.1} parent=59 // pred_fallthru
          _
        %s373 = sand.u32 %s36, 1
        %s374 = scalar_lea.sflag [#allocation3], %s373
        %s375 = sand.u32 %s36, 1
        %s376 = smul.addr %s375, 16
        %s377 = scalar_lea.vmem [#allocation2], %s376
        %p378 = pneg %p49
        %p379 = pneg %p46
        %p380 = pneg %p70
        %p381 = pneg %p67
        %p382 = pneg %p91
        %p383 = pneg %p88
        %p384 = pneg %p112
        %p385 = pneg %p109
        %p386 = pneg %p133
        %p387 = pneg %p130
        %p388 = pneg %p154
        %p389 = pneg %p151
        %p390 = pneg %p175
        %p391 = pneg %p172
        %p392 = pneg %p196
        %p393 = pneg %p193
        %p394 = pneg %p217
        %p395 = pneg %p214
        %p396 = pneg %p238
        %p397 = pneg %p235
        %p398 = pneg %p264
        %p399 = pneg %p261
        %s400 = sand.u32 %s251, 1
        %s401 = scalar_lea.sflag [#allocation4], %s400
        %s402 = sand.u32 %s251, 1
        %s403 = smul.addr %s402, 16
        %s404 = scalar_lea.vmem [#allocation8], %s403
        %v405 = vld [vmem:[%s360] sm:$0xff]
        %v406 = vld [vmem:[%s360 + $0x8] sm:$0xff]
        %v407 = vld [vmem:[%s2] sm:$0x3]
        %v408 = vld [vmem:[%s3] sm:$0x3]
        %v409 = vadd.f32 %v405, %v406
        %410 = vadd.xlane.f32.xlu0 %v409
        %v411 = vpop.xlane.xlu0 %410
        %v412 = vrcp.pop 256.0
        %v413 = vmul.f32 %v411, %v412
        %v414 = vsub.f32 %v405, %v413
        %v415 = vsub.f32 %v406, %v413
        %v416 = vmul.f32 %v414, %v414
        %v417 = vmul.f32 %v415, %v415
        %v418 = vadd.f32 %v416, %v417
        %419 = vadd.xlane.f32.xlu0 %v418
        %v420 = vpop.xlane.xlu0 %419
        %v421 = vmul.f32 %v420, %v412
        %v422 = vadd.f32 %v421, 1e-05
        %v423 = vrsqrt.pop %v422
        %v424 = vmul.f32 %v414, %v423
        %v425 = vmul.f32 %v415, %v423
        %v427 = vlaneseq
        %v428 = vshrl.u32 %v427, 7
        %v429 = vsub.s32 0, %v428
        %v430 = vrot.slane %v407, %v429
        %v431 = vlaneseq
        %v432 = vshrl.u32 %v431, 7
        %v433 = vsub.s32 1, %v432
        %v434 = vrot.slane %v407, %v433
        %v437 = vmul.f32 %v424, %v430
        %v438 = vmul.f32 %v425, %v434
        %v440 = vlaneseq
        %v441 = vshrl.u32 %v440, 7
        %v442 = vsub.s32 0, %v441
        %v443 = vrot.slane %v408, %v442
        %v444 = vlaneseq
        %v445 = vshrl.u32 %v444, 7
        %v446 = vsub.s32 1, %v445
        %v447 = vrot.slane %v408, %v446
        %v450 = vadd.f32 %v437, %v443
        %v451 = vadd.f32 %v438, %v447
        %v452 = vld [vmem:[#allocation5] sm:$0xff]
        %v453 = vld [vmem:[#allocation5 + $0x8] sm:$0xff]
        %v454 = vld [vmem:[#allocation5 + $0x10] sm:$0xff]
        %v455 = vld [vmem:[#allocation5 + $0x18] sm:$0xff]
        %v456 = vld [vmem:[#allocation5 + $0x20] sm:$0xff]
        %v457 = vld [vmem:[#allocation5 + $0x28] sm:$0xff]
        %v458 = vld [vmem:[#allocation5 + $0x30] sm:$0xff]
        %v459 = vld [vmem:[#allocation5 + $0x38] sm:$0xff]
        %v460 = vld [vmem:[#allocation5 + $0x40] sm:$0xff]
        %v461 = vld [vmem:[#allocation5 + $0x48] sm:$0xff]
        %v462 = vld [vmem:[#allocation5 + $0x50] sm:$0xff]
        %v463 = vld [vmem:[#allocation5 + $0x58] sm:$0xff]
        %v464 = vld [vmem:[#allocation5 + $0x60] sm:$0xff]
        %v465 = vld [vmem:[#allocation5 + $0x68] sm:$0xff]
        %v466 = vld [vmem:[#allocation5 + $0x70] sm:$0xff]
        %v467 = vld [vmem:[#allocation5 + $0x78] sm:$0xff]
        %v468 = vld [vmem:[#allocation5 + $0x80] sm:$0xff]
        %v469 = vld [vmem:[#allocation5 + $0x88] sm:$0xff]
        %v470 = vld [vmem:[#allocation5 + $0x90] sm:$0xff]
        %v471 = vld [vmem:[#allocation5 + $0x98] sm:$0xff]
        %v472 = vld [vmem:[#allocation5 + $0xa0] sm:$0xff]
        %v473 = vld [vmem:[#allocation5 + $0xa8] sm:$0xff]
        %v474 = vld [vmem:[#allocation5 + $0xb0] sm:$0xff]
        %v475 = vld [vmem:[#allocation5 + $0xb8] sm:$0xff]
        %v476 = vld [vmem:[#allocation5 + $0xc0] sm:$0xff]
        %v477 = vld [vmem:[#allocation5 + $0xc8] sm:$0xff]
        %v478 = vld [vmem:[#allocation5 + $0xd0] sm:$0xff]
        %v479 = vld [vmem:[#allocation5 + $0xd8] sm:$0xff]
        %v480 = vld [vmem:[#allocation5 + $0xe0] sm:$0xff]
        %v481 = vld [vmem:[#allocation5 + $0xe8] sm:$0xff]
        %v482 = vld [vmem:[#allocation5 + $0xf0] sm:$0xff]
        %v483 = vld [vmem:[#allocation5 + $0xf8] sm:$0xff]
        %v484 = vld [vmem:[%s5] sm:$0x1]
        %v486 = vlaneseq
        %v487 = vshrl.u32 %v486, 7
        %v488 = vsub.s32 0, %v487
        %v489 = vrot.slane %v484, %v488
        %491 = vmatprep.subr.mxu0 0.0
        %492 = vmatpush1.msra.mxu0 %v452
        %493 = vmatprep.subr.mxu0 0.0
        %494 = vmatpush1.msra.mxu0 %v453
        %495 = vmatprep.subr.mxu0 0.0
        %496 = vmatpush1.msra.mxu0 %v454
        %497 = vmatprep.subr.mxu0 0.0
        %498 = vmatpush1.msra.mxu0 %v455
        %499 = vmatprep.subr.mxu0 0.0
        %500 = vmatpush1.msra.mxu0 %v456
        %501 = vmatprep.subr.mxu0 0.0
        %502 = vmatpush1.msra.mxu0 %v457
        %503 = vmatprep.subr.mxu0 0.0
        %504 = vmatpush1.msra.mxu0 %v458
        %505 = vmatprep.subr.mxu0 0.0
        %506 = vmatpush1.msra.mxu0 %v459
        %507 = vmatprep.subr.mxu0 0.0
        %508 = vmatpush1.msra.mxu0 %v460
        %509 = vmatprep.subr.mxu0 0.0
        %510 = vmatpush1.msra.mxu0 %v461
        %511 = vmatprep.subr.mxu0 0.0
        %512 = vmatpush1.msra.mxu0 %v462
        %513 = vmatprep.subr.mxu0 0.0
        %514 = vmatpush1.msra.mxu0 %v463
        %515 = vmatprep.subr.mxu0 0.0
        %516 = vmatpush1.msra.mxu0 %v464
        %517 = vmatprep.subr.mxu0 0.0
        %518 = vmatpush1.msra.mxu0 %v465
        %519 = vmatprep.subr.mxu0 0.0
        %520 = vmatpush1.msra.mxu0 %v466
        %521 = vmatprep.subr.mxu0 0.0
        %522 = vmatpush1.msra.mxu0 %v467
        %523 = vmatprep.subr.mxu0 0.0
        %524 = vmatpush1.msra.mxu0 %v468
        %525 = vmatprep.subr.mxu0 0.0
        %526 = vmatpush1.msra.mxu0 %v469
        %527 = vmatprep.subr.mxu0 0.0
        %528 = vmatpush1.msra.mxu0 %v470
        %529 = vmatprep.subr.mxu0 0.0
        %530 = vmatpush1.msra.mxu0 %v471
        %531 = vmatprep.subr.mxu0 0.0
        %532 = vmatpush1.msra.mxu0 %v472
        %533 = vmatprep.subr.mxu0 0.0
        %534 = vmatpush1.msra.mxu0 %v473
        %535 = vmatprep.subr.mxu0 0.0
        %536 = vmatpush1.msra.mxu0 %v474
        %537 = vmatprep.subr.mxu0 0.0
        %538 = vmatpush1.msra.mxu0 %v475
        %539 = vmatprep.subr.mxu0 0.0
        %540 = vmatpush1.msra.mxu0 %v476
        %541 = vmatprep.subr.mxu0 0.0
        %542 = vmatpush1.msra.mxu0 %v477
        %543 = vmatprep.subr.mxu0 0.0
        %544 = vmatpush1.msra.mxu0 %v478
        %545 = vmatprep.subr.mxu0 0.0
        %546 = vmatpush1.msra.mxu0 %v479
        %547 = vmatprep.subr.mxu0 0.0
        %548 = vmatpush1.msra.mxu0 %v480
        %549 = vmatprep.subr.mxu0 0.0
        %550 = vmatpush1.msra.mxu0 %v481
        %551 = vmatprep.subr.mxu0 0.0
        %552 = vmatpush1.msra.mxu0 %v482
        %553 = vmatprep.subr.mxu0 0.0
        %554 = vmatpush1.msra.mxu0 %v483
        %555 = vmatprep.mubr.f32.mxu0 %v451
        %556 = vmatmul.mubr.f32.gmra.mrb[0].mxu0 %v450
        %v557 = vpop.f32.mrb[0].mxu0
        %v558 = vadd.f32 %v489, %v557
        %v559 = vpop.f32.mrb[0].mxu0
        %560 = vdwg.mxu0
        %v561 = vld [vmem:[%s6] sm:$0x1]
        %v562 = vld [vmem:[%s7] sm:$0x1]
        %563 = vadd.xlane.f32.xlu0 %v558
        %v564 = vpop.xlane.xlu0 %563
        %v565 = vrcp.pop 128.0
        %v566 = vmul.f32 %v564, %v565
        %v567 = vsub.f32 %v558, %v566
        %v568 = vmul.f32 %v567, %v567
        %569 = vadd.xlane.f32.xlu0 %v568
        %v570 = vpop.xlane.xlu0 %569
        %v571 = vmul.f32 %v570, %v565
        %v572 = vadd.f32 %v571, 1e-05
        %v573 = vrsqrt.pop %v572
        %v574 = vmul.f32 %v567, %v573
        %v576 = vlaneseq
        %v577 = vshrl.u32 %v576, 7
        %v578 = vsub.s32 0, %v577
        %v579 = vrot.slane %v561, %v578
        %v581 = vmul.f32 %v574, %v579
        %v583 = vlaneseq
        %v584 = vshrl.u32 %v583, 7
        %v585 = vsub.s32 0, %v584
        %v586 = vrot.slane %v562, %v585
        %v588 = vadd.f32 %v581, %v586
        %v589 = vmax.f32 %v588, 0.0
        %v590 = vld [vmem:[#allocation7] sm:$0xff]
        %v591 = vld [vmem:[#allocation7 + $0x8] sm:$0xff]
        %v592 = vld [vmem:[#allocation7 + $0x10] sm:$0xff]
        %v593 = vld [vmem:[#allocation7 + $0x18] sm:$0xff]
        %v594 = vld [vmem:[#allocation7 + $0x20] sm:$0xff]
        %v595 = vld [vmem:[#allocation7 + $0x28] sm:$0xff]
        %v596 = vld [vmem:[#allocation7 + $0x30] sm:$0xff]
        %v597 = vld [vmem:[#allocation7 + $0x38] sm:$0xff]
        %v598 = vld [vmem:[#allocation7 + $0x40] sm:$0xff]
        %v599 = vld [vmem:[#allocation7 + $0x48] sm:$0xff]
        %v600 = vld [vmem:[#allocation7 + $0x50] sm:$0xff]
        %v601 = vld [vmem:[#allocation7 + $0x58] sm:$0xff]
        %v602 = vld [vmem:[#allocation7 + $0x60] sm:$0xff]
        %v603 = vld [vmem:[#allocation7 + $0x68] sm:$0xff]
        %v604 = vld [vmem:[#allocation7 + $0x70] sm:$0xff]
        %v605 = vld [vmem:[#allocation7 + $0x78] sm:$0xff]
        %v606 = vld [vmem:[#allocation7 + $0x80] sm:$0xff]
        %v607 = vld [vmem:[#allocation7 + $0x88] sm:$0xff]
        %v608 = vld [vmem:[#allocation7 + $0x90] sm:$0xff]
        %v609 = vld [vmem:[#allocation7 + $0x98] sm:$0xff]
        %v610 = vld [vmem:[#allocation7 + $0xa0] sm:$0xff]
        %v611 = vld [vmem:[#allocation7 + $0xa8] sm:$0xff]
        %v612 = vld [vmem:[#allocation7 + $0xb0] sm:$0xff]
        %v613 = vld [vmem:[#allocation7 + $0xb8] sm:$0xff]
        %v614 = vld [vmem:[#allocation7 + $0xc0] sm:$0xff]
        %v615 = vld [vmem:[#allocation7 + $0xc8] sm:$0xff]
        %v616 = vld [vmem:[#allocation7 + $0xd0] sm:$0xff]
        %v617 = vld [vmem:[#allocation7 + $0xd8] sm:$0xff]
        %v618 = vld [vmem:[#allocation7 + $0xe0] sm:$0xff]
        %v619 = vld [vmem:[#allocation7 + $0xe8] sm:$0xff]
        %v620 = vld [vmem:[#allocation7 + $0xf0] sm:$0xff]
        %v621 = vld [vmem:[#allocation7 + $0xf8] sm:$0xff]
        %v622 = vld [vmem:[%s9] sm:$0x3]
        %v624 = vlaneseq
        %v625 = vshrl.u32 %v624, 7
        %v626 = vsub.s32 0, %v625
        %v627 = vrot.slane %v622, %v626
        %v628 = vlaneseq
        %v629 = vshrl.u32 %v628, 7
        %v630 = vsub.s32 1, %v629
        %v631 = vrot.slane %v622, %v630
        %634 = vmatprep.subr.mxu0 %v591
        %635 = vmatpush1.msra.mxu0 %v590
        %636 = vmatprep.subr.mxu0 %v593
        %637 = vmatpush1.msra.mxu0 %v592
        %638 = vmatprep.subr.mxu0 %v595
        %639 = vmatpush1.msra.mxu0 %v594
        %640 = vmatprep.subr.mxu0 %v597
        %641 = vmatpush1.msra.mxu0 %v596
        %642 = vmatprep.subr.mxu0 %v599
        %643 = vmatpush1.msra.mxu0 %v598
        %644 = vmatprep.subr.mxu0 %v601
        %645 = vmatpush1.msra.mxu0 %v600
        %646 = vmatprep.subr.mxu0 %v603
        %647 = vmatpush1.msra.mxu0 %v602
        %648 = vmatprep.subr.mxu0 %v605
        %649 = vmatpush1.msra.mxu0 %v604
        %650 = vmatprep.subr.mxu0 %v607
        %651 = vmatpush1.msra.mxu0 %v606
        %652 = vmatprep.subr.mxu0 %v609
        %653 = vmatpush1.msra.mxu0 %v608
        %654 = vmatprep.subr.mxu0 %v611
        %655 = vmatpush1.msra.mxu0 %v610
        %656 = vmatprep.subr.mxu0 %v613
        %657 = vmatpush1.msra.mxu0 %v612
        %658 = vmatprep.subr.mxu0 %v615
        %659 = vmatpush1.msra.mxu0 %v614
        %660 = vmatprep.subr.mxu0 %v617
        %661 = vmatpush1.msra.mxu0 %v616
        %662 = vmatprep.subr.mxu0 %v619
        %663 = vmatpush1.msra.mxu0 %v618
        %664 = vmatprep.subr.mxu0 %v621
        %665 = vmatpush1.msra.mxu0 %v620
        %666 = vmatprep.subr.mxu0 0.0
        %667 = vmatpush1.msra.mxu0 0.0
        %668 = vmatprep.subr.mxu0 0.0
        %669 = vmatpush1.msra.mxu0 0.0
        %670 = vmatprep.subr.mxu0 0.0
        %671 = vmatpush1.msra.mxu0 0.0
        %672 = vmatprep.subr.mxu0 0.0
        %673 = vmatpush1.msra.mxu0 0.0
        %674 = vmatprep.subr.mxu0 0.0
        %675 = vmatpush1.msra.mxu0 0.0
        %676 = vmatprep.subr.mxu0 0.0
        %677 = vmatpush1.msra.mxu0 0.0
        %678 = vmatprep.subr.mxu0 0.0
        %679 = vmatpush1.msra.mxu0 0.0
        %680 = vmatprep.subr.mxu0 0.0
        %681 = vmatpush1.msra.mxu0 0.0
        %682 = vmatprep.subr.mxu0 0.0
        %683 = vmatpush1.msra.mxu0 0.0
        %684 = vmatprep.subr.mxu0 0.0
        %685 = vmatpush1.msra.mxu0 0.0
        %686 = vmatprep.subr.mxu0 0.0
        %687 = vmatpush1.msra.mxu0 0.0
        %688 = vmatprep.subr.mxu0 0.0
        %689 = vmatpush1.msra.mxu0 0.0
        %690 = vmatprep.subr.mxu0 0.0
        %691 = vmatpush1.msra.mxu0 0.0
        %692 = vmatprep.subr.mxu0 0.0
        %693 = vmatpush1.msra.mxu0 0.0
        %694 = vmatprep.subr.mxu0 0.0
        %695 = vmatpush1.msra.mxu0 0.0
        %696 = vmatprep.subr.mxu0 0.0
        %697 = vmatpush1.msra.mxu0 0.0
        %698 = vmatprep.mubr.f32.mxu0 0.0
        %699 = vmatmul.mubr.f32.gmra.mrb[0].mxu0 %v589
        %v700 = vpop.f32.mrb[0].mxu0
        %v701 = vadd.f32 %v627, %v700
        %v702 = vpop.f32.mrb[0].mxu0
        %v703 = vadd.f32 %v631, %v702
        %704 = vdwg.mxu0
        %v705 = vxor.u32 %v701, 2147483648
        %v706 = vxor.u32 %v703, 2147483648
        %v707 = vmul.f32 %v705, 1.442695
        %v708 = vpow.pop %v707
        %v709 = vmul.f32 %v706, 1.442695
        %v710 = vpow.pop %v709
        %v711 = vadd.f32 %v708, 1.0
        %v712 = vadd.f32 %v710, 1.0
        %v713 = vrcp.pop %v711
        %v714 = vmul.f32 1.0, %v713
        %v715 = vrcp.pop %v712
        %v716 = vmul.f32 1.0, %v715
        %v717 = vld [vmem:[%s1] sm:$0x3]
        %v718 = vxor.u32 %v717, 2147483648
        %v719 = vmul.f32 %v718, 1.442695
        %v720 = vpow.pop %v719
        %v721 = vadd.f32 %v720, 1.0
        %v722 = vrcp.pop %v721
        %v723 = vmul.f32 1.0, %v722
        %v725 = vlaneseq
        %v726 = vshrl.u32 %v725, 7
        %v727 = vsub.s32 0, %v726
        %v728 = vrot.slane %v723, %v727
        %v729 = vlaneseq
        %v730 = vshrl.u32 %v729, 7
        %v731 = vsub.s32 1, %v730
        %v732 = vrot.slane %v723, %v731
        %v735 = vmul.f32 %v405, %v728
        %v736 = vmul.f32 %v406, %v732
        %v737 = vmul.f32 %v735, %v714
        %v738 = vmul.f32 %v736, %v716
        %739 = vst [vmem:[%s404] sm:$0xff] %v737
        %740 = vst [vmem:[%s404 + $0x8] sm:$0xff] %v738
        %s741 = sand.u32 %s251, 1
        %s742 = scalar_lea.sflag [#allocation4], %s741
        %s743 = sand.u32 %s251, 1
        %s744 = smul.addr %s743, 16
        %s745 = scalar_lea.vmem [#allocation8], %s744
        // Predicated region
        $region73: #{tpu_custom_call.1} parent=59 // pred_check
          %p746 = pneg %p261
        $region74: #{tpu_custom_call.1} parent=59 // pred_check_branch
          %748 = sbr.rel (%p746) target = $region76
        $region75: #{tpu_custom_call.1} parent=59 // pred_region
          %s750 = ssub.s32 256, 256
          %751 = vsyncadd %s742, %s750
          %s752 = smul.addr %s28, 2
          %s753 = smul.addr %s752, 128
          %s754 = scalar_lea.hbm %s10, %s753
          %s756 = sshll.u32 %s745, 4
          %s757 = int_to_ptr.vmem [resolvable:$true] %s756
          %759 = dma.vmem_to_hbm [thread:$0]  %s757, 256, %s754, %s742
        $region76: #{tpu_custom_call.1} parent=59 // pred_fallthru
          _
      $region60: #{tpu_custom_call.1} parent=5 // pred_fallthru
        _
      %p760 = scmp.le.s32.totalorder 2, %s23
      // Predicated region
      $region77: #{tpu_custom_call.1} parent=5 // pred_check
        %p761 = pneg %p760
      $region78: #{tpu_custom_call.1} parent=5 // pred_check_branch
        %763 = sbr.rel (%p761) target = $region80
      $region79: #{tpu_custom_call.1} parent=5 // pred_region
        %s764 = ssub.s32 %s23, 2
        // Predicated region
        $region81: #{tpu_custom_call.1} parent=79 // pred_check
          %p765 = pneg %p267
        $region82: #{tpu_custom_call.1} parent=79 // pred_check_branch
          %767 = sbr.rel (%p765) target = $region84
        $region83: #{tpu_custom_call.1} parent=79 // pred_region
          %s768 = sand.u32 %s252, 1
          %s769 = scalar_lea.sflag [#allocation4], %s768
          %s770 = sand.u32 %s252, 1
          %s771 = smul.addr %s770, 16
          %s772 = scalar_lea.vmem [#allocation8], %s771
          %773 = dma.done %s769, 256
        $region84: #{tpu_custom_call.1} parent=79 // pred_fallthru
          _
      $region80: #{tpu_custom_call.1} parent=5 // pred_fallthru
        _
    $region6: #{tpu_custom_call.1} parent=1 // loop_footer
      %s27 = sadd.s32 1, %s23
    $region7: #{tpu_custom_call.1} parent=1 // loop_footer_branch
      %22 = sbr.rel target = $region3
    $region8: #{tpu_custom_call.1} parent=1 // loop_exit
      _
    %774 = vsyncpa [#allocation3], 1
    %s775 = scalar_lea.sflag [#allocation3], 1
    %776 = vsyncpa %s775, 1
    %777 = vsyncpa [#allocation6], 1
    %778 = vsyncpa [#allocation4], 1
    %s779 = scalar_lea.sflag [#allocation4], 1
    %780 = vsyncpa %s779, 1

// kernel: tpu_custom_call.1
$region0: #{tpu_custom_call.1}
  #allocation0 [shape = 'u32[]', space=smem, size = 0x4, offset = 0x4, fixed_abs, tag = 'smem constant byte address 0x4 - core index']
  #allocation1 [shape = 'u32[144,128]{1,0:T(1,128)}', space=vmem, size = 0x12000, scoped, tag = 'internal scratch']
  %s0 = inlined_call_operand.hbm [shape: f32[16,256], index: 0, kind: input, shape index: {}]
  %s1 = inlined_call_operand.vmem [shape: f32[1,256], index: 1, kind: input, shape index: {}]
  %s2 = inlined_call_operand.vmem [shape: f32[1,256], index: 2, kind: input, shape index: {}]
  %s3 = inlined_call_operand.vmem [shape: f32[1,256], index: 3, kind: input, shape index: {}]
  %s4 = inlined_call_operand.hbm [shape: f32[256,128], index: 4, kind: input, shape index: {}]
  %s5 = inlined_call_operand.vmem [shape: f32[1,128], index: 5, kind: input, shape index: {}]
  %s6 = inlined_call_operand.vmem [shape: f32[1,128], index: 6, kind: input, shape index: {}]
  %s7 = inlined_call_operand.vmem [shape: f32[1,128], index: 7, kind: input, shape index: {}]
  %s8 = inlined_call_operand.hbm [shape: f32[128,256], index: 8, kind: input, shape index: {}]
  %s9 = inlined_call_operand.vmem [shape: f32[1,256], index: 9, kind: input, shape index: {}]
  %s10 = inlined_call_operand.hbm [shape: f32[16,256], index: 10, kind: output, shape index: {}]
  %s11 = sld [smem:[#allocation0]]
  $region85: #{tpu_custom_call.1} parent=0
    _
  %s13 = ssub.s32 1, %s11
  %s14 = scalar_select 0, %s13, %s11
  $region1: #{tpu_custom_call.1} parent=0
    #allocation2 [shape = 'u8[16384]{0}', space=vmem, size = 0x4000, scoped, tag = 'input window, operand 0']
    #allocation3 [shape = 's32[2]{0}', space=sflag, size = 0x8, scoped, tag = 'scoped memory for tpu_custom_call.1']
    #allocation4 [shape = 's32[2]{0}', space=sflag, size = 0x8, scoped, tag = 'scoped memory for tpu_custom_call.1']
    #allocation5 [shape = 'u8[131072]{0}', space=vmem, size = 0x20000, scoped, tag = 'input window, operand 4, single buffered']
    #allocation6 [shape = 's32[1]{0}', space=sflag, size = 0x4, scoped, tag = 'scoped memory for tpu_custom_call.1']
    #allocation7 [shape = 'u8[131072]{0}', space=vmem, size = 0x20000, scoped, tag = 'input window, operand 8, single buffered']
    #allocation8 [shape = 'u8[16384]{0}', space=vmem, size = 0x4000, scoped, tag = 'output window, operand 0']
    %15 = vsyncpa [#allocation3], 0
    %s16 = scalar_lea.sflag [#allocation3], 1
    %17 = vsyncpa %s16, 0
    %18 = vsyncpa [#allocation6], 0
    %19 = vsyncpa [#allocation4], 0
    %s20 = scalar_lea.sflag [#allocation4], 1
    %21 = vsyncpa %s20, 0
    loop: start=0, step=1, limit=4
    $region2: #{tpu_custom_call.1} parent=1 // loop_pre_header
      _
    $region3: #{tpu_custom_call.1} parent=1 // loop_header
      %s23 = sphi 0, %s27
      %p24 = scmp.ge.s32.totalorder %s23, 4
      %s33 = sphi 0, %s35
      %s36 = sphi 0, %s33
      %s37 = sphi 0, %s36
      %s53 = sphi 0, %s37
      %s57 = sphi 0, %s57
      %s59 = sphi 0, %s57
      %s60 = sphi 0, %s59
      %s74 = sphi 0, %s60
      %s78 = sphi 0, %s78
      %s80 = sphi 0, %s78
      %s81 = sphi 0, %s80
      %s95 = sphi 0, %s81
      %s99 = sphi 0, %s99
      %s101 = sphi 0, %s99
      %s102 = sphi 0, %s101
      %s116 = sphi 0, %s102
      %s120 = sphi 0, %s120
      %s122 = sphi 0, %s120
      %s123 = sphi 0, %s122
      %s137 = sphi 0, %s123
      %s141 = sphi 0, %s141
      %s143 = sphi 0, %s141
      %s144 = sphi 0, %s143
      %s158 = sphi 0, %s144
      %s162 = sphi 0, %s162
      %s164 = sphi 0, %s162
      %s165 = sphi 0, %s164
      %s179 = sphi 0, %s165
      %s183 = sphi 0, %s183
      %s185 = sphi 0, %s183
      %s186 = sphi 0, %s185
      %s200 = sphi 0, %s186
      %s204 = sphi 0, %s204
      %s206 = sphi 0, %s204
      %s207 = sphi 0, %s206
      %s221 = sphi 0, %s207
      %s225 = sphi 0, %s225
      %s227 = sphi 0, %s225
      %s228 = sphi 0, %s227
      %s242 = sphi 0, %s228
      %s248 = sphi 0, %s250
      %s251 = sphi 0, %s248
      %s252 = sphi 0, %s251
      %s268 = sphi 0, %s252
    $region4: #{tpu_custom_call.1} parent=1 // loop_header_branch
      %26 = sbr.rel (%p24) target = $region8
    $region5: #{tpu_custom_call.1} parent=1 // loop_body
      %s28 = ssub.s32 %s23, 1
      %s29 = ssub.s32 %s23, 2
      %s30 = sadd.s32 %s23, 1
      %s31 = ssub.s32 %s23, %s30
      %p32 = scmp.eq.s32.totalorder %s31, 0
      %s34 = sadd.s32 %s33, 1
      %s35 = scalar_select %p32, %s33, %s34
      %p38 = pneg %p32
      %p39 = scmp.eq.s32.totalorder %s23, 1
      %p40 = por %p38, %p39
      %p41 = scmp.ne.s32.totalorder %s33, %s36
      %p42 = scmp.eq.s32.totalorder %s23, 0
      %p43 = por %p41, %p42
      %p44 = scmp.ne.s32.totalorder %s33, %s36
      %p45 = scmp.eq.s32.totalorder %s28, 1
      %p46 = por %p44, %p45
      %p47 = scmp.ne.s32.totalorder %s36, %s37
      %p48 = scmp.eq.s32.totalorder %s28, 0
      %p49 = por %p47, %p48
      %p50 = scmp.ne.s32.totalorder %s36, %s37
      %p51 = scmp.eq.s32.totalorder %s29, 1
      %p52 = por %p50, %p51
      %p54 = scmp.ne.s32.totalorder %s37, %s53
      %p55 = scmp.eq.s32.totalorder %s29, 0
      %p56 = por %p54, %p55
      %s58 = sadd.s32 %s57, 1
      %p61 = scmp.eq.s32.totalorder %s23, 1
      %p62 = scmp.ne.s32.totalorder %s57, %s59
      %p63 = scmp.eq.s32.totalorder %s23, 0
      %p64 = por %p62, %p63
      %p65 = scmp.ne.s32.totalorder %s57, %s59
      %p66 = scmp.eq.s32.totalorder %s28, 1
      %p67 = por %p65, %p66
      %p68 = scmp.ne.s32.totalorder %s59, %s60
      %p69 = scmp.eq.s32.totalorder %s28, 0
      %p70 = por %p68, %p69
      %p71 = scmp.ne.s32.totalorder %s59, %s60
      %p72 = scmp.eq.s32.totalorder %s29, 1
      %p73 = por %p71, %p72
      %p75 = scmp.ne.s32.totalorder %s60, %s74
      %p76 = scmp.eq.s32.totalorder %s29, 0
      %p77 = por %p75, %p76
      %s79 = sadd.s32 %s78, 1
      %p82 = scmp.eq.s32.totalorder %s23, 1
      %p83 = scmp.ne.s32.totalorder %s78, %s80
      %p84 = scmp.eq.s32.totalorder %s23, 0
      %p85 = por %p83, %p84
      %p86 = scmp.ne.s32.totalorder %s78, %s80
      %p87 = scmp.eq.s32.totalorder %s28, 1
      %p88 = por %p86, %p87
      %p89 = scmp.ne.s32.totalorder %s80, %s81
      %p90 = scmp.eq.s32.totalorder %s28, 0
      %p91 = por %p89, %p90
      %p92 = scmp.ne.s32.totalorder %s80, %s81
      %p93 = scmp.eq.s32.totalorder %s29, 1
      %p94 = por %p92, %p93
      %p96 = scmp.ne.s32.totalorder %s81, %s95
      %p97 = scmp.eq.s32.totalorder %s29, 0
      %p98 = por %p96, %p97
      %s100 = sadd.s32 %s99, 1
      %p103 = scmp.eq.s32.totalorder %s23, 1
      %p104 = scmp.ne.s32.totalorder %s99, %s101
      %p105 = scmp.eq.s32.totalorder %s23, 0
      %p106 = por %p104, %p105
      %p107 = scmp.ne.s32.totalorder %s99, %s101
      %p108 = scmp.eq.s32.totalorder %s28, 1
      %p109 = por %p107, %p108
      %p110 = scmp.ne.s32.totalorder %s101, %s102
      %p111 = scmp.eq.s32.totalorder %s28, 0
      %p112 = por %p110, %p111
      %p113 = scmp.ne.s32.totalorder %s101, %s102
      %p114 = scmp.eq.s32.totalorder %s29, 1
      %p115 = por %p113, %p114
      %p117 = scmp.ne.s32.totalorder %s102, %s116
      %p118 = scmp.eq.s32.totalorder %s29, 0
      %p119 = por %p117, %p118
      %s121 = sadd.s32 %s120, 1
      %p124 = scmp.eq.s32.totalorder %s23, 1
      %p125 = scmp.ne.s32.totalorder %s120, %s122
      %p126 = scmp.eq.s32.totalorder %s23, 0
      %p127 = por %p125, %p126
      %p128 = scmp.ne.s32.totalorder %s120, %s122
      %p129 = scmp.eq.s32.totalorder %s28, 1
      %p130 = por %p128, %p129
      %p131 = scmp.ne.s32.totalorder %s122, %s123
      %p132 = scmp.eq.s32.totalorder %s28, 0
      %p133 = por %p131, %p132
      %p134 = scmp.ne.s32.totalorder %s122, %s123
      %p135 = scmp.eq.s32.totalorder %s29, 1
      %p136 = por %p134, %p135
      %p138 = scmp.ne.s32.totalorder %s123, %s137
      %p139 = scmp.eq.s32.totalorder %s29, 0
      %p140 = por %p138, %p139
      %s142 = sadd.s32 %s141, 1
      %p145 = scmp.eq.s32.totalorder %s23, 1
      %p146 = scmp.ne.s32.totalorder %s141, %s143
      %p147 = scmp.eq.s32.totalorder %s23, 0
      %p148 = por %p146, %p147
      %p149 = scmp.ne.s32.totalorder %s141, %s143
      %p150 = scmp.eq.s32.totalorder %s28, 1
      %p151 = por %p149, %p150
      %p152 = scmp.ne.s32.totalorder %s143, %s144
      %p153 = scmp.eq.s32.totalorder %s28, 0
      %p154 = por %p152, %p153
      %p155 = scmp.ne.s32.totalorder %s143, %s144
      %p156 = scmp.eq.s32.totalorder %s29, 1
      %p157 = por %p155, %p156
      %p159 = scmp.ne.s32.totalorder %s144, %s158
      %p160 = scmp.eq.s32.totalorder %s29, 0
      %p161 = por %p159, %p160
      %s163 = sadd.s32 %s162, 1
      %p166 = scmp.eq.s32.totalorder %s23, 1
      %p167 = scmp.ne.s32.totalorder %s162, %s164
      %p168 = scmp.eq.s32.totalorder %s23, 0
      %p169 = por %p167, %p168
      %p170 = scmp.ne.s32.totalorder %s162, %s164
      %p171 = scmp.eq.s32.totalorder %s28, 1
      %p172 = por %p170, %p171
      %p173 = scmp.ne.s32.totalorder %s164, %s165
      %p174 = scmp.eq.s32.totalorder %s28, 0
      %p175 = por %p173, %p174
      %p176 = scmp.ne.s32.totalorder %s164, %s165
      %p177 = scmp.eq.s32.totalorder %s29, 1
      %p178 = por %p176, %p177
      %p180 = scmp.ne.s32.totalorder %s165, %s179
      %p181 = scmp.eq.s32.totalorder %s29, 0
      %p182 = por %p180, %p181
      %s184 = sadd.s32 %s183, 1
      %p187 = scmp.eq.s32.totalorder %s23, 1
      %p188 = scmp.ne.s32.totalorder %s183, %s185
      %p189 = scmp.eq.s32.totalorder %s23, 0
      %p190 = por %p188, %p189
      %p191 = scmp.ne.s32.totalorder %s183, %s185
      %p192 = scmp.eq.s32.totalorder %s28, 1
      %p193 = por %p191, %p192
      %p194 = scmp.ne.s32.totalorder %s185, %s186
      %p195 = scmp.eq.s32.totalorder %s28, 0
      %p196 = por %p194, %p195
      %p197 = scmp.ne.s32.totalorder %s185, %s186
      %p198 = scmp.eq.s32.totalorder %s29, 1
      %p199 = por %p197, %p198
      %p201 = scmp.ne.s32.totalorder %s186, %s200
      %p202 = scmp.eq.s32.totalorder %s29, 0
      %p203 = por %p201, %p202
      %s205 = sadd.s32 %s204, 1
      %p208 = scmp.eq.s32.totalorder %s23, 1
      %p209 = scmp.ne.s32.totalorder %s204, %s206
      %p210 = scmp.eq.s32.totalorder %s23, 0
      %p211 = por %p209, %p210
      %p212 = scmp.ne.s32.totalorder %s204, %s206
      %p213 = scmp.eq.s32.totalorder %s28, 1
      %p214 = por %p212, %p213
      %p215 = scmp.ne.s32.totalorder %s206, %s207
      %p216 = scmp.eq.s32.totalorder %s28, 0
      %p217 = por %p215, %p216
      %p218 = scmp.ne.s32.totalorder %s206, %s207
      %p219 = scmp.eq.s32.totalorder %s29, 1
      %p220 = por %p218, %p219
      %p222 = scmp.ne.s32.totalorder %s207, %s221
      %p223 = scmp.eq.s32.totalorder %s29, 0
      %p224 = por %p222, %p223
      %s226 = sadd.s32 %s225, 1
      %p229 = scmp.eq.s32.totalorder %s23, 1
      %p230 = scmp.ne.s32.totalorder %s225, %s227
      %p231 = scmp.eq.s32.totalorder %s23, 0
      %p232 = por %p230, %p231
      %p233 = scmp.ne.s32.totalorder %s225, %s227
      %p234 = scmp.eq.s32.totalorder %s28, 1
      %p235 = por %p233, %p234
      %p236 = scmp.ne.s32.totalorder %s227, %s228
      %p237 = scmp.eq.s32.totalorder %s28, 0
      %p238 = por %p236, %p237
      %p239 = scmp.ne.s32.totalorder %s227, %s228
      %p240 = scmp.eq.s32.totalorder %s29, 1
      %p241 = por %p239, %p240
      %p243 = scmp.ne.s32.totalorder %s228, %s242
      %p244 = scmp.eq.s32.totalorder %s29, 0
      %p245 = por %p243, %p244
      %s246 = ssub.s32 %s23, %s30
      %p247 = scmp.eq.s32.totalorder %s246, 0
      %s249 = sadd.s32 %s248, 1
      %s250 = scalar_select %p247, %s248, %s249
      %p253 = pneg %p247
      %p254 = scmp.eq.s32.totalorder %s23, 1
      %p255 = por %p253, %p254
      %p256 = scmp.ne.s32.totalorder %s248, %s251
      %p257 = scmp.eq.s32.totalorder %s23, 0
      %p258 = por %p256, %p257
      %p259 = scmp.ne.s32.totalorder %s248, %s251
      %p260 = scmp.eq.s32.totalorder %s28, 1
      %p261 = por %p259, %p260
      %p262 = scmp.ne.s32.totalorder %s251, %s252
      %p263 = scmp.eq.s32.totalorder %s28, 0
      %p264 = por %p262, %p263
      %p265 = scmp.ne.s32.totalorder %s251, %s252
      %p266 = scmp.eq.s32.totalorder %s29, 1
      %p267 = por %p265, %p266
      %p269 = scmp.ne.s32.totalorder %s252, %s268
      %p270 = scmp.eq.s32.totalorder %s29, 0
      %p271 = por %p269, %p270
      %p272 = scmp.le.s32.totalorder 1, %s23
      %p273 = scmp.lt.s32.totalorder %s23, 3
      %p274 = pnand %p272, %p273
      %p275 = pneg %p274
      // Predicated region
      $region9: #{tpu_custom_call.1} parent=5 // pred_check
        _
      $region10: #{tpu_custom_call.1} parent=5 // pred_check_branch
        %277 = sbr.rel (%p274) target = $region12
      $region11: #{tpu_custom_call.1} parent=5 // pred_region
        %s278 = ssub.s32 %s23, 1
        // Predicated region
        $region13: #{tpu_custom_call.1} parent=11 // pred_check
          %p279 = pneg %p70
        $region14: #{tpu_custom_call.1} parent=11 // pred_check_branch
          %281 = sbr.rel (%p279) target = $region16
        $region15: #{tpu_custom_call.1} parent=11 // pred_region
          _
        $region16: #{tpu_custom_call.1} parent=11 // pred_fallthru
          _
        // Predicated region
        $region17: #{tpu_custom_call.1} parent=11 // pred_check
          %p282 = pneg %p91
        $region18: #{tpu_custom_call.1} parent=11 // pred_check_branch
          %284 = sbr.rel (%p282) target = $region20
        $region19: #{tpu_custom_call.1} parent=11 // pred_region
          _
        $region20: #{tpu_custom_call.1} parent=11 // pred_fallthru
          _
        // Predicated region
        $region21: #{tpu_custom_call.1} parent=11 // pred_check
          %p285 = pneg %p112
        $region22: #{tpu_custom_call.1} parent=11 // pred_check_branch
          %287 = sbr.rel (%p285) target = $region24
        $region23: #{tpu_custom_call.1} parent=11 // pred_region
          _
        $region24: #{tpu_custom_call.1} parent=11 // pred_fallthru
          _
        // Predicated region
        $region25: #{tpu_custom_call.1} parent=11 // pred_check
          %p288 = pneg %p133
        $region26: #{tpu_custom_call.1} parent=11 // pred_check_branch
          %290 = sbr.rel (%p288) target = $region28
        $region27: #{tpu_custom_call.1} parent=11 // pred_region
          %s292 = ssub.s32 4096, 4096
          %293 = vsyncadd [#allocation6], %s292
          %s294 = sshll.u32 [#allocation5], 4
          %s295 = int_to_ptr.vmem [resolvable:$true] %s294
          %300 = dma.hbm_to_vmem [thread:$0]  %s4, 4096, %s295, [#allocation6], 128, 128, 8
        $region28: #{tpu_custom_call.1} parent=11 // pred_fallthru
          _
        // Predicated region
        $region29: #{tpu_custom_call.1} parent=11 // pred_check
          %p301 = pneg %p154
        $region30: #{tpu_custom_call.1} parent=11 // pred_check_branch
          %303 = sbr.rel (%p301) target = $region32
        $region31: #{tpu_custom_call.1} parent=11 // pred_region
          _
        $region32: #{tpu_custom_call.1} parent=11 // pred_fallthru
          _
        // Predicated region
        $region33: #{tpu_custom_call.1} parent=11 // pred_check
          %p304 = pneg %p175
        $region34: #{tpu_custom_call.1} parent=11 // pred_check_branch
          %306 = sbr.rel (%p304) target = $region36
        $region35: #{tpu_custom_call.1} parent=11 // pred_region
          _
        $region36: #{tpu_custom_call.1} parent=11 // pred_fallthru
          _
        // Predicated region
        $region37: #{tpu_custom_call.1} parent=11 // pred_check
          %p307 = pneg %p196
        $region38: #{tpu_custom_call.1} parent=11 // pred_check_branch
          %309 = sbr.rel (%p307) target = $region40
        $region39: #{tpu_custom_call.1} parent=11 // pred_region
          _
        $region40: #{tpu_custom_call.1} parent=11 // pred_fallthru
          _
        // Predicated region
        $region41: #{tpu_custom_call.1} parent=11 // pred_check
          %p310 = pneg %p217
        $region42: #{tpu_custom_call.1} parent=11 // pred_check_branch
          %312 = sbr.rel (%p310) target = $region44
        $region43: #{tpu_custom_call.1} parent=11 // pred_region
          %s314 = ssub.s32 4096, 4096
          %315 = vsyncadd [#allocation6], %s314
          %s316 = sshll.u32 [#allocation7], 4
          %s317 = int_to_ptr.vmem [resolvable:$true] %s316
          %322 = dma.hbm_to_vmem [thread:$0]  %s8, 4096, %s317, [#allocation6], 256, 256, 16
        $region44: #{tpu_custom_call.1} parent=11 // pred_fallthru
          _
        // Predicated region
        $region45: #{tpu_custom_call.1} parent=11 // pred_check
          %p323 = pneg %p238
        $region46: #{tpu_custom_call.1} parent=11 // pred_check_branch
          %325 = sbr.rel (%p323) target = $region48
        $region47: #{tpu_custom_call.1} parent=11 // pred_region
          _
        $region48: #{tpu_custom_call.1} parent=11 // pred_fallthru
          _
      $region12: #{tpu_custom_call.1} parent=5 // pred_fallthru
        _
      %p326 = scmp.lt.s32.totalorder %s23, 2
      // Predicated region
      $region49: #{tpu_custom_call.1} parent=5 // pred_check
        %p327 = pneg %p326
      $region50: #{tpu_custom_call.1} parent=5 // pred_check_branch
        %329 = sbr.rel (%p327) target = $region52
      $region51: #{tpu_custom_call.1} parent=5 // pred_region
        // Predicated region
        $region53: #{tpu_custom_call.1} parent=51 // pred_check
          %p330 = pneg %p43
        $region54: #{tpu_custom_call.1} parent=51 // pred_check_branch
          %332 = sbr.rel (%p330) target = $region56
        $region55: #{tpu_custom_call.1} parent=51 // pred_region
          %s333 = sand.u32 %s33, 1
          %s334 = scalar_lea.sflag [#allocation3], %s333
          %s335 = sand.u32 %s33, 1
          %s336 = smul.addr %s335, 16
          %s337 = scalar_lea.vmem [#allocation2], %s336
          %s339 = ssub.s32 256, 256
          %340 = vsyncadd %s334, %s339
          %s341 = smul.addr %s23, 2
          %s342 = smul.addr %s341, 128
          %s343 = scalar_lea.hbm %s0, %s342
          %s345 = sshll.u32 %s337, 4
          %s346 = int_to_ptr.vmem [resolvable:$true] %s345
          %348 = dma.hbm_to_vmem [thread:$0]  %s343, 256, %s346, %s334
        $region56: #{tpu_custom_call.1} parent=51 // pred_fallthru
          _
      $region52: #{tpu_custom_call.1} parent=5 // pred_fallthru
        _
      %p349 = scmp.le.s32.totalorder 1, %s23
      %p350 = scmp.lt.s32.totalorder %s23, 3
      %p351 = pnand %p349, %p350
      %p352 = pneg %p351
      // Predicated region
      $region57: #{tpu_custom_call.1} parent=5 // pred_check
        _
      $region58: #{tpu_custom_call.1} parent=5 // pred_check_branch
        %354 = sbr.rel (%p351) target = $region60
      $region59: #{tpu_custom_call.1} parent=5 // pred_region
        %s355 = ssub.s32 %s23, 1
        %s356 = sand.u32 %s36, 1
        %s357 = scalar_lea.sflag [#allocation3], %s356
        %s358 = sand.u32 %s36, 1
        %s359 = smul.addr %s358, 16
        %s360 = scalar_lea.vmem [#allocation2], %s359
        // Predicated region
        $region61: #{tpu_custom_call.1} parent=59 // pred_check
          %p361 = pneg %p49
        $region62: #{tpu_custom_call.1} parent=59 // pred_check_branch
          %363 = sbr.rel (%p361) target = $region64
        $region63: #{tpu_custom_call.1} parent=59 // pred_region
          %364 = dma.done %s357, 256
        $region64: #{tpu_custom_call.1} parent=59 // pred_fallthru
          _
        // Predicated region
        $region65: #{tpu_custom_call.1} parent=59 // pred_check
          %p365 = pneg %p133
        $region66: #{tpu_custom_call.1} parent=59 // pred_check_branch
          %367 = sbr.rel (%p365) target = $region68
        $region67: #{tpu_custom_call.1} parent=59 // pred_region
          %368 = dma.done [#allocation6], 4096
        $region68: #{tpu_custom_call.1} parent=59 // pred_fallthru
          _
        // Predicated region
        $region69: #{tpu_custom_call.1} parent=59 // pred_check
          %p369 = pneg %p217
        $region70: #{tpu_custom_call.1} parent=59 // pred_check_branch
          %371 = sbr.rel (%p369) target = $region72
        $region71: #{tpu_custom_call.1} parent=59 // pred_region
          %372 = dma.done [#allocation6], 4096
        $region72: #{tpu_custom_call.1} parent=59 // pred_fallthru
          _
        %s373 = sand.u32 %s36, 1
        %s374 = scalar_lea.sflag [#allocation3], %s373
        %s375 = sand.u32 %s36, 1
        %s376 = smul.addr %s375, 16
        %s377 = scalar_lea.vmem [#allocation2], %s376
        %p378 = pneg %p49
        %p379 = pneg %p46
        %p380 = pneg %p70
        %p381 = pneg %p67
        %p382 = pneg %p91
        %p383 = pneg %p88
        %p384 = pneg %p112
        %p385 = pneg %p109
        %p386 = pneg %p133
        %p387 = pneg %p130
        %p388 = pneg %p154
        %p389 = pneg %p151
        %p390 = pneg %p175
        %p391 = pneg %p172
        %p392 = pneg %p196
        %p393 = pneg %p193
        %p394 = pneg %p217
        %p395 = pneg %p214
        %p396 = pneg %p238
        %p397 = pneg %p235
        %p398 = pneg %p264
        %p399 = pneg %p261
        %s400 = sand.u32 %s251, 1
        %s401 = scalar_lea.sflag [#allocation4], %s400
        %s402 = sand.u32 %s251, 1
        %s403 = smul.addr %s402, 16
        %s404 = scalar_lea.vmem [#allocation8], %s403
        %v405 = vld [vmem:[%s360] sm:$0xff]
        %v406 = vld [vmem:[%s360 + $0x8] sm:$0xff]
        %v407 = vld [vmem:[%s2] sm:$0x3]
        %v408 = vld [vmem:[%s3] sm:$0x3]
        %v409 = vadd.f32 %v405, %v406
        %410 = vadd.xlane.f32.xlu0 %v409
        %v411 = vpop.xlane.xlu0 %410
        %v412 = vrcp.pop 256.0
        %v413 = vmul.f32 %v411, %v412
        %v414 = vsub.f32 %v405, %v413
        %v415 = vsub.f32 %v406, %v413
        %v416 = vmul.f32 %v414, %v414
        %v417 = vmul.f32 %v415, %v415
        %v418 = vadd.f32 %v416, %v417
        %419 = vadd.xlane.f32.xlu0 %v418
        %v420 = vpop.xlane.xlu0 %419
        %v421 = vmul.f32 %v420, %v412
        %v422 = vadd.f32 %v421, 1e-05
        %v423 = vrsqrt.pop %v422
        %v424 = vmul.f32 %v414, %v423
        %v425 = vmul.f32 %v415, %v423
        %v427 = vlaneseq
        %v428 = vshrl.u32 %v427, 7
        %v429 = vsub.s32 0, %v428
        %v430 = vrot.slane %v407, %v429
        %v431 = vlaneseq
        %v432 = vshrl.u32 %v431, 7
        %v433 = vsub.s32 1, %v432
        %v434 = vrot.slane %v407, %v433
        %v437 = vmul.f32 %v424, %v430
        %v438 = vmul.f32 %v425, %v434
        %v440 = vlaneseq
        %v441 = vshrl.u32 %v440, 7
        %v442 = vsub.s32 0, %v441
        %v443 = vrot.slane %v408, %v442
        %v444 = vlaneseq
        %v445 = vshrl.u32 %v444, 7
        %v446 = vsub.s32 1, %v445
        %v447 = vrot.slane %v408, %v446
        %v450 = vadd.f32 %v437, %v443
        %v451 = vadd.f32 %v438, %v447
        %v452 = vld [vmem:[#allocation5] sm:$0xff]
        %v453 = vld [vmem:[#allocation5 + $0x8] sm:$0xff]
        %v454 = vld [vmem:[#allocation5 + $0x10] sm:$0xff]
        %v455 = vld [vmem:[#allocation5 + $0x18] sm:$0xff]
        %v456 = vld [vmem:[#allocation5 + $0x20] sm:$0xff]
        %v457 = vld [vmem:[#allocation5 + $0x28] sm:$0xff]
        %v458 = vld [vmem:[#allocation5 + $0x30] sm:$0xff]
        %v459 = vld [vmem:[#allocation5 + $0x38] sm:$0xff]
        %v460 = vld [vmem:[#allocation5 + $0x40] sm:$0xff]
        %v461 = vld [vmem:[#allocation5 + $0x48] sm:$0xff]
        %v462 = vld [vmem:[#allocation5 + $0x50] sm:$0xff]
        %v463 = vld [vmem:[#allocation5 + $0x58] sm:$0xff]
        %v464 = vld [vmem:[#allocation5 + $0x60] sm:$0xff]
        %v465 = vld [vmem:[#allocation5 + $0x68] sm:$0xff]
        %v466 = vld [vmem:[#allocation5 + $0x70] sm:$0xff]
        %v467 = vld [vmem:[#allocation5 + $0x78] sm:$0xff]
        %v468 = vld [vmem:[#allocation5 + $0x80] sm:$0xff]
        %v469 = vld [vmem:[#allocation5 + $0x88] sm:$0xff]
        %v470 = vld [vmem:[#allocation5 + $0x90] sm:$0xff]
        %v471 = vld [vmem:[#allocation5 + $0x98] sm:$0xff]
        %v472 = vld [vmem:[#allocation5 + $0xa0] sm:$0xff]
        %v473 = vld [vmem:[#allocation5 + $0xa8] sm:$0xff]
        %v474 = vld [vmem:[#allocation5 + $0xb0] sm:$0xff]
        %v475 = vld [vmem:[#allocation5 + $0xb8] sm:$0xff]
        %v476 = vld [vmem:[#allocation5 + $0xc0] sm:$0xff]
        %v477 = vld [vmem:[#allocation5 + $0xc8] sm:$0xff]
        %v478 = vld [vmem:[#allocation5 + $0xd0] sm:$0xff]
        %v479 = vld [vmem:[#allocation5 + $0xd8] sm:$0xff]
        %v480 = vld [vmem:[#allocation5 + $0xe0] sm:$0xff]
        %v481 = vld [vmem:[#allocation5 + $0xe8] sm:$0xff]
        %v482 = vld [vmem:[#allocation5 + $0xf0] sm:$0xff]
        %v483 = vld [vmem:[#allocation5 + $0xf8] sm:$0xff]
        %v484 = vld [vmem:[%s5] sm:$0x1]
        %v486 = vlaneseq
        %v487 = vshrl.u32 %v486, 7
        %v488 = vsub.s32 0, %v487
        %v489 = vrot.slane %v484, %v488
        %491 = vmatprep.subr.mxu0 0.0
        %492 = vmatpush1.msra.mxu0 %v452
        %493 = vmatprep.subr.mxu0 0.0
        %494 = vmatpush1.msra.mxu0 %v453
        %495 = vmatprep.subr.mxu0 0.0
        %496 = vmatpush1.msra.mxu0 %v454
        %497 = vmatprep.subr.mxu0 0.0
        %498 = vmatpush1.msra.mxu0 %v455
        %499 = vmatprep.subr.mxu0 0.0
        %500 = vmatpush1.msra.mxu0 %v456
        %501 = vmatprep.subr.mxu0 0.0
        %502 = vmatpush1.msra.mxu0 %v457
        %503 = vmatprep.subr.mxu0 0.0
        %504 = vmatpush1.msra.mxu0 %v458
        %505 = vmatprep.subr.mxu0 0.0
        %506 = vmatpush1.msra.mxu0 %v459
        %507 = vmatprep.subr.mxu0 0.0
        %508 = vmatpush1.msra.mxu0 %v460
        %509 = vmatprep.subr.mxu0 0.0
        %510 = vmatpush1.msra.mxu0 %v461
        %511 = vmatprep.subr.mxu0 0.0
        %512 = vmatpush1.msra.mxu0 %v462
        %513 = vmatprep.subr.mxu0 0.0
        %514 = vmatpush1.msra.mxu0 %v463
        %515 = vmatprep.subr.mxu0 0.0
        %516 = vmatpush1.msra.mxu0 %v464
        %517 = vmatprep.subr.mxu0 0.0
        %518 = vmatpush1.msra.mxu0 %v465
        %519 = vmatprep.subr.mxu0 0.0
        %520 = vmatpush1.msra.mxu0 %v466
        %521 = vmatprep.subr.mxu0 0.0
        %522 = vmatpush1.msra.mxu0 %v467
        %523 = vmatprep.subr.mxu0 0.0
        %524 = vmatpush1.msra.mxu0 %v468
        %525 = vmatprep.subr.mxu0 0.0
        %526 = vmatpush1.msra.mxu0 %v469
        %527 = vmatprep.subr.mxu0 0.0
        %528 = vmatpush1.msra.mxu0 %v470
        %529 = vmatprep.subr.mxu0 0.0
        %530 = vmatpush1.msra.mxu0 %v471
        %531 = vmatprep.subr.mxu0 0.0
        %532 = vmatpush1.msra.mxu0 %v472
        %533 = vmatprep.subr.mxu0 0.0
        %534 = vmatpush1.msra.mxu0 %v473
        %535 = vmatprep.subr.mxu0 0.0
        %536 = vmatpush1.msra.mxu0 %v474
        %537 = vmatprep.subr.mxu0 0.0
        %538 = vmatpush1.msra.mxu0 %v475
        %539 = vmatprep.subr.mxu0 0.0
        %540 = vmatpush1.msra.mxu0 %v476
        %541 = vmatprep.subr.mxu0 0.0
        %542 = vmatpush1.msra.mxu0 %v477
        %543 = vmatprep.subr.mxu0 0.0
        %544 = vmatpush1.msra.mxu0 %v478
        %545 = vmatprep.subr.mxu0 0.0
        %546 = vmatpush1.msra.mxu0 %v479
        %547 = vmatprep.subr.mxu0 0.0
        %548 = vmatpush1.msra.mxu0 %v480
        %549 = vmatprep.subr.mxu0 0.0
        %550 = vmatpush1.msra.mxu0 %v481
        %551 = vmatprep.subr.mxu0 0.0
        %552 = vmatpush1.msra.mxu0 %v482
        %553 = vmatprep.subr.mxu0 0.0
        %554 = vmatpush1.msra.mxu0 %v483
        %555 = vmatprep.mubr.f32.mxu0 %v451
        %556 = vmatmul.mubr.f32.gmra.mrb[0].mxu0 %v450
        %v557 = vpop.f32.mrb[0].mxu0
        %v558 = vadd.f32 %v489, %v557
        %v559 = vpop.f32.mrb[0].mxu0
        %560 = vdwg.mxu0
        %v561 = vld [vmem:[%s6] sm:$0x1]
        %v562 = vld [vmem:[%s7] sm:$0x1]
        %563 = vadd.xlane.f32.xlu0 %v558
        %v564 = vpop.xlane.xlu0 %563
        %v565 = vrcp.pop 128.0
        %v566 = vmul.f32 %v564, %v565
        %v567 = vsub.f32 %v558, %v566
        %v568 = vmul.f32 %v567, %v567
        %569 = vadd.xlane.f32.xlu0 %v568
        %v570 = vpop.xlane.xlu0 %569
        %v571 = vmul.f32 %v570, %v565
        %v572 = vadd.f32 %v571, 1e-05
        %v573 = vrsqrt.pop %v572
        %v574 = vmul.f32 %v567, %v573
        %v576 = vlaneseq
        %v577 = vshrl.u32 %v576, 7
        %v578 = vsub.s32 0, %v577
        %v579 = vrot.slane %v561, %v578
        %v581 = vmul.f32 %v574, %v579
        %v583 = vlaneseq
        %v584 = vshrl.u32 %v583, 7
        %v585 = vsub.s32 0, %v584
        %v586 = vrot.slane %v562, %v585
        %v588 = vadd.f32 %v581, %v586
        %v589 = vmax.f32 %v588, 0.0
        %v590 = vld [vmem:[#allocation7] sm:$0xff]
        %v591 = vld [vmem:[#allocation7 + $0x8] sm:$0xff]
        %v592 = vld [vmem:[#allocation7 + $0x10] sm:$0xff]
        %v593 = vld [vmem:[#allocation7 + $0x18] sm:$0xff]
        %v594 = vld [vmem:[#allocation7 + $0x20] sm:$0xff]
        %v595 = vld [vmem:[#allocation7 + $0x28] sm:$0xff]
        %v596 = vld [vmem:[#allocation7 + $0x30] sm:$0xff]
        %v597 = vld [vmem:[#allocation7 + $0x38] sm:$0xff]
        %v598 = vld [vmem:[#allocation7 + $0x40] sm:$0xff]
        %v599 = vld [vmem:[#allocation7 + $0x48] sm:$0xff]
        %v600 = vld [vmem:[#allocation7 + $0x50] sm:$0xff]
        %v601 = vld [vmem:[#allocation7 + $0x58] sm:$0xff]
        %v602 = vld [vmem:[#allocation7 + $0x60] sm:$0xff]
        %v603 = vld [vmem:[#allocation7 + $0x68] sm:$0xff]
        %v604 = vld [vmem:[#allocation7 + $0x70] sm:$0xff]
        %v605 = vld [vmem:[#allocation7 + $0x78] sm:$0xff]
        %v606 = vld [vmem:[#allocation7 + $0x80] sm:$0xff]
        %v607 = vld [vmem:[#allocation7 + $0x88] sm:$0xff]
        %v608 = vld [vmem:[#allocation7 + $0x90] sm:$0xff]
        %v609 = vld [vmem:[#allocation7 + $0x98] sm:$0xff]
        %v610 = vld [vmem:[#allocation7 + $0xa0] sm:$0xff]
        %v611 = vld [vmem:[#allocation7 + $0xa8] sm:$0xff]
        %v612 = vld [vmem:[#allocation7 + $0xb0] sm:$0xff]
        %v613 = vld [vmem:[#allocation7 + $0xb8] sm:$0xff]
        %v614 = vld [vmem:[#allocation7 + $0xc0] sm:$0xff]
        %v615 = vld [vmem:[#allocation7 + $0xc8] sm:$0xff]
        %v616 = vld [vmem:[#allocation7 + $0xd0] sm:$0xff]
        %v617 = vld [vmem:[#allocation7 + $0xd8] sm:$0xff]
        %v618 = vld [vmem:[#allocation7 + $0xe0] sm:$0xff]
        %v619 = vld [vmem:[#allocation7 + $0xe8] sm:$0xff]
        %v620 = vld [vmem:[#allocation7 + $0xf0] sm:$0xff]
        %v621 = vld [vmem:[#allocation7 + $0xf8] sm:$0xff]
        %v622 = vld [vmem:[%s9] sm:$0x3]
        %v624 = vlaneseq
        %v625 = vshrl.u32 %v624, 7
        %v626 = vsub.s32 0, %v625
        %v627 = vrot.slane %v622, %v626
        %v628 = vlaneseq
        %v629 = vshrl.u32 %v628, 7
        %v630 = vsub.s32 1, %v629
        %v631 = vrot.slane %v622, %v630
        %634 = vmatprep.subr.mxu0 %v591
        %635 = vmatpush1.msra.mxu0 %v590
        %636 = vmatprep.subr.mxu0 %v593
        %637 = vmatpush1.msra.mxu0 %v592
        %638 = vmatprep.subr.mxu0 %v595
        %639 = vmatpush1.msra.mxu0 %v594
        %640 = vmatprep.subr.mxu0 %v597
        %641 = vmatpush1.msra.mxu0 %v596
        %642 = vmatprep.subr.mxu0 %v599
        %643 = vmatpush1.msra.mxu0 %v598
        %644 = vmatprep.subr.mxu0 %v601
        %645 = vmatpush1.msra.mxu0 %v600
        %646 = vmatprep.subr.mxu0 %v603
        %647 = vmatpush1.msra.mxu0 %v602
        %648 = vmatprep.subr.mxu0 %v605
        %649 = vmatpush1.msra.mxu0 %v604
        %650 = vmatprep.subr.mxu0 %v607
        %651 = vmatpush1.msra.mxu0 %v606
        %652 = vmatprep.subr.mxu0 %v609
        %653 = vmatpush1.msra.mxu0 %v608
        %654 = vmatprep.subr.mxu0 %v611
        %655 = vmatpush1.msra.mxu0 %v610
        %656 = vmatprep.subr.mxu0 %v613
        %657 = vmatpush1.msra.mxu0 %v612
        %658 = vmatprep.subr.mxu0 %v615
        %659 = vmatpush1.msra.mxu0 %v614
        %660 = vmatprep.subr.mxu0 %v617
        %661 = vmatpush1.msra.mxu0 %v616
        %662 = vmatprep.subr.mxu0 %v619
        %663 = vmatpush1.msra.mxu0 %v618
        %664 = vmatprep.subr.mxu0 %v621
        %665 = vmatpush1.msra.mxu0 %v620
        %666 = vmatprep.subr.mxu0 0.0
        %667 = vmatpush1.msra.mxu0 0.0
        %668 = vmatprep.subr.mxu0 0.0
        %669 = vmatpush1.msra.mxu0 0.0
        %670 = vmatprep.subr.mxu0 0.0
        %671 = vmatpush1.msra.mxu0 0.0
        %672 = vmatprep.subr.mxu0 0.0
        %673 = vmatpush1.msra.mxu0 0.0
        %674 = vmatprep.subr.mxu0 0.0
        %675 = vmatpush1.msra.mxu0 0.0
        %676 = vmatprep.subr.mxu0 0.0
        %677 = vmatpush1.msra.mxu0 0.0
        %678 = vmatprep.subr.mxu0 0.0
        %679 = vmatpush1.msra.mxu0 0.0
        %680 = vmatprep.subr.mxu0 0.0
        %681 = vmatpush1.msra.mxu0 0.0
        %682 = vmatprep.subr.mxu0 0.0
        %683 = vmatpush1.msra.mxu0 0.0
        %684 = vmatprep.subr.mxu0 0.0
        %685 = vmatpush1.msra.mxu0 0.0
        %686 = vmatprep.subr.mxu0 0.0
        %687 = vmatpush1.msra.mxu0 0.0
        %688 = vmatprep.subr.mxu0 0.0
        %689 = vmatpush1.msra.mxu0 0.0
        %690 = vmatprep.subr.mxu0 0.0
        %691 = vmatpush1.msra.mxu0 0.0
        %692 = vmatprep.subr.mxu0 0.0
        %693 = vmatpush1.msra.mxu0 0.0
        %694 = vmatprep.subr.mxu0 0.0
        %695 = vmatpush1.msra.mxu0 0.0
        %696 = vmatprep.subr.mxu0 0.0
        %697 = vmatpush1.msra.mxu0 0.0
        %698 = vmatprep.mubr.f32.mxu0 0.0
        %699 = vmatmul.mubr.f32.gmra.mrb[0].mxu0 %v589
        %v700 = vpop.f32.mrb[0].mxu0
        %v701 = vadd.f32 %v627, %v700
        %v702 = vpop.f32.mrb[0].mxu0
        %v703 = vadd.f32 %v631, %v702
        %704 = vdwg.mxu0
        %v705 = vxor.u32 %v701, 2147483648
        %v706 = vxor.u32 %v703, 2147483648
        %v707 = vmul.f32 %v705, 1.442695
        %v708 = vpow.pop %v707
        %v709 = vmul.f32 %v706, 1.442695
        %v710 = vpow.pop %v709
        %v711 = vadd.f32 %v708, 1.0
        %v712 = vadd.f32 %v710, 1.0
        %v713 = vrcp.pop %v711
        %v714 = vmul.f32 1.0, %v713
        %v715 = vrcp.pop %v712
        %v716 = vmul.f32 1.0, %v715
        %v717 = vld [vmem:[%s1] sm:$0x3]
        %v718 = vxor.u32 %v717, 2147483648
        %v719 = vmul.f32 %v718, 1.442695
        %v720 = vpow.pop %v719
        %v721 = vadd.f32 %v720, 1.0
        %v722 = vrcp.pop %v721
        %v723 = vmul.f32 1.0, %v722
        %v725 = vlaneseq
        %v726 = vshrl.u32 %v725, 7
        %v727 = vsub.s32 0, %v726
        %v728 = vrot.slane %v723, %v727
        %v729 = vlaneseq
        %v730 = vshrl.u32 %v729, 7
        %v731 = vsub.s32 1, %v730
        %v732 = vrot.slane %v723, %v731
        %v735 = vmul.f32 %v405, %v728
        %v736 = vmul.f32 %v406, %v732
        %v737 = vmul.f32 %v735, %v714
        %v738 = vmul.f32 %v736, %v716
        %739 = vst [vmem:[%s404] sm:$0xff] %v737
        %740 = vst [vmem:[%s404 + $0x8] sm:$0xff] %v738
        %s741 = sand.u32 %s251, 1
        %s742 = scalar_lea.sflag [#allocation4], %s741
        %s743 = sand.u32 %s251, 1
        %s744 = smul.addr %s743, 16
        %s745 = scalar_lea.vmem [#allocation8], %s744
        // Predicated region
        $region73: #{tpu_custom_call.1} parent=59 // pred_check
          %p746 = pneg %p261
        $region74: #{tpu_custom_call.1} parent=59 // pred_check_branch
          %748 = sbr.rel (%p746) target = $region76
        $region75: #{tpu_custom_call.1} parent=59 // pred_region
          %s750 = ssub.s32 256, 256
          %751 = vsyncadd %s742, %s750
          %s752 = smul.addr %s28, 2
          %s753 = smul.addr %s752, 128
          %s754 = scalar_lea.hbm %s10, %s753
          %s756 = sshll.u32 %s745, 4
          %s757 = int_to_ptr.vmem [resolvable:$true] %s756
          %759 = dma.vmem_to_hbm [thread:$0]  %s757, 256, %s754, %s742
        $region76: #{tpu_custom_call.1} parent=59 // pred_fallthru
          _
      $region60: #{tpu_custom_call.1} parent=5 // pred_fallthru
        _
      %p760 = scmp.le.s32.totalorder 2, %s23
      // Predicated region
      $region77: #{tpu_custom_call.1} parent=5 // pred_check
        %p761 = pneg %p760
      $region78: #{tpu_custom_call.1} parent=5 // pred_check_branch
        %763 = sbr.rel (%p761) target = $region80
      $region79: #{tpu_custom_call.1} parent=5 // pred_region
        %s764 = ssub.s32 %s23, 2
        // Predicated region
        $region81: #{tpu_custom_call.1} parent=79 // pred_check
          %p765 = pneg %p267
        $region82: #{tpu_custom_call.1} parent=79 // pred_check_branch
          %767 = sbr.rel (%p765) target = $region84
        $region83: #{tpu_custom_call.1} parent=79 // pred_region
          %s768 = sand.u32 %s252, 1
          %s769 = scalar_lea.sflag [#allocation4], %s768
          %s770 = sand.u32 %s252, 1
          %s771 = smul.addr %s770, 16
          %s772 = scalar_lea.vmem [#allocation8], %s771
          %773 = dma.done %s769, 256
        $region84: #{tpu_custom_call.1} parent=79 // pred_fallthru
          _
      $region80: #{tpu_custom_call.1} parent=5 // pred_fallthru
        _
    $region6: #{tpu_custom_call.1} parent=1 // loop_footer
      %s27 = sadd.s32 1, %s23
    $region7: #{tpu_custom_call.1} parent=1 // loop_footer_branch
      %22 = sbr.rel target = $region3
    $region8: #{tpu_custom_call.1} parent=1 // loop_exit
      _
    %774 = vsyncpa [#allocation3], 1
    %s775 = scalar_lea.sflag [#allocation3], 1
    %776 = vsyncpa %s775, 1
    %777 = vsyncpa [#allocation6], 1
    %778 = vsyncpa [#allocation4], 1
    %s779 = scalar_lea.sflag [#allocation4], 1
    %780 = vsyncpa %s779, 1

</llo_original>
